<compile_context>
chip_gen: v7x
topology: tpu7x:2x2x1
jax: 0.10.0
libtpu: 0.0.40
codegen_flags: <defaults>
</compile_context>

<pallas_src>
import functools

import jax
import jax.numpy as jnp
from jax.experimental import pallas as pl
from jax.experimental.pallas import tpu as pltpu


# --------------------------------------------------------------------------- helpers
def _round_up(x, m):
    return ((x + m - 1) // m) * m


def _tile_candidates(n, quantum):
    """Legal Pallas tile sizes along one dim: the full dim, or divisors of n that are
    multiples of `quantum` (the (8, 128) BlockSpec tiling constraint)."""
    cands = [n]
    for t in range(n - 1, 0, -1):
        if n % t == 0 and t % quantum == 0:
            cands.append(t)
    return cands


def _vmem_budget_bytes():
    """Per-generation scoped-VMEM limit and pipelined-buffer budget."""
    try:
        cap = int(pltpu.get_tpu_info().vmem_capacity_bytes)
    except Exception:
        cap = 64 * 1024 * 1024            # conservative default (v7x-sized VMEM)
    if cap <= 64 * 1024 * 1024:
        limit = 48 * 1024 * 1024          # v7x-class: leave headroom on 64 MiB VMEM
    else:
        limit = 64 * 1024 * 1024          # v5e/v6e-class: 128 MiB physical VMEM
    budget = int(limit * 0.85)            # headroom for compiler-internal scratch
    return cap, limit, budget


def _block_footprint_bytes(bt, st, depth, d_model, k, c_pad,
                           feat_isize, attn_isize, w_isize, bias_isize):
    """Padded VMEM bytes of all pipelined buffers + scratch for one (bt, st) choice.
    Conservatively assumes double buffering for every pipelined operand."""
    st_sub = _round_up(st, 8)             # features: St sits on sublanes
    st_lane = _round_up(st, 128)          # attention: St sits on lanes
    d_lane = _round_up(d_model, 128)
    bt_sub = _round_up(bt, 8)
    feat = depth * 2 * bt * st_sub * d_lane * feat_isize
    attn = depth * 2 * bt_sub * st_lane * attn_isize
    w = 2 * _round_up(k, 8) * c_pad * w_isize
    bias = 2 * 8 * c_pad * bias_isize
    out = 2 * bt_sub * c_pad * 4
    pooled = bt_sub * _round_up(k, 128) * 4
    return feat + attn + w + bias + out + pooled


def _choose_tiles(B, S, depth, d_model, k, c_pad, feat_isize, attn_isize,
                  w_isize, bias_isize, budget, max_b_unroll=8):
    """Pick (Bt, St) so the padded, double-buffered footprint fits `budget`.

    St prefers the full sequence (fewer grid steps); Bt stays small (per-row unrolled
    MXU pooling) and leaves >= 2 parallel B blocks for the two v7x TensorCores whenever
    the batch allows.  Note: if B has no divisor that is a multiple of 8, Bt falls back
    to B itself (typical classification batches are 8-divisible)."""
    bt_all = _tile_candidates(B, 8)
    bt_pref = [t for t in bt_all if t <= max_b_unroll and B // t >= 2]
    if not bt_pref:
        bt_pref = [t for t in bt_all if t <= max_b_unroll] or [min(bt_all)]
    st_all = _tile_candidates(S, 128)

    def fp(bt, st):
        return _block_footprint_bytes(bt, st, depth, d_model, k, c_pad,
                                      feat_isize, attn_isize, w_isize, bias_isize)

    best = None
    for st in st_all:
        for bt in bt_pref:
            f = fp(bt, st)
            if f <= budget:
                score = (bt * st, st)     # maximize bytes per grid step, then St
                if best is None or score > best[0]:
                    best = (score, bt, st, f)
    if best is not None:
        return best[1], best[2], best[3]
    bt, st = min(bt_pref), min(st_all)    # smallest legal tiles; may exceed budget
    return bt, st, fp(bt, st)


# --------------------------------------------------------------------------- kernel
def fusion_classifier_kernel(*refs, depth, d_model, b_tile):
    """refs = feat_0..feat_{depth-1}  : (Bt, St, D)
              attn_0..attn_{depth-1}  : (Bt, St)            (dense 2-D blocks)
              w_ref                   : (depth*D, C_pad)     (native dtype)
              b_ref                   : (1, C_pad)
              out_ref                 : (Bt, C_pad)
              pooled_ref (scratch)    : (Bt, depth*D) f32, carried across S tiles."""
    feat_refs = refs[:depth]
    attn_refs = refs[depth:2 * depth]
    w_ref = refs[2 * depth]
    b_ref = refs[2 * depth + 1]
    out_ref = refs[2 * depth + 2]
    pooled_ref = refs[2 * depth + 3]

    j = pl.program_id(1)          # S (reduction) axis, innermost / sequential

    @pl.when(j == 0)
    def _init():
        pooled_ref[...] = jnp.zeros_like(pooled_ref)

    # Attention-weighted pooling for this S tile: one (1, St) @ (St, D) MXU matmul per
    # (batch row, depth).  Doing the S-contraction on the MXU keeps the attention block
    # dense 2-D (no 128-lane padding, no lane<->sublane broadcast), and accumulation is
    # written straight into the per-depth static slice of the pooled scratch.
    D = d_model
    for b in range(b_tile):
        for d in range(depth):
            a_row = attn_refs[d][pl.ds(b, 1), :].astype(jnp.float32)      # (1, St)
            f_blk = feat_refs[d][b].astype(jnp.float32)                   # (St, D)
            part = jnp.dot(a_row, f_blk, preferred_element_type=jnp.float32)
            pooled_ref[pl.ds(b, 1), pl.ds(d * D, D)] += part

    @pl.when(j == pl.num_programs(1) - 1)
    def _finalize():
        # One fused lane-dense MXU matmul: (Bt, depth*D) @ (depth*D, C_pad).
        acc = jnp.dot(pooled_ref[...], w_ref[...].astype(jnp.float32),
                      preferred_element_type=jnp.float32)
        out_ref[...] = (acc + b_ref[...].astype(jnp.float32)).astype(out_ref.dtype)


# --------------------------------------------------------------------------- wrapper
def _build_call(*, depth, B, S, D, K, C_pad, Bt, St, vmem_limit, cost,
                single_buffer_consts):
    kernel = functools.partial(fusion_classifier_kernel, depth=depth,
                               d_model=D, b_tile=Bt)
    const_kw = {"pipeline_mode": pl.Buffered(1)} if single_buffer_consts else {}
    feat_specs = [pl.BlockSpec((Bt, St, D), lambda i, j: (i, j, 0))
                  for _ in range(depth)]
    attn_specs = [pl.BlockSpec((Bt, St), lambda i, j: (i, j))
                  for _ in range(depth)]
    w_spec = pl.BlockSpec((K, C_pad), lambda i, j: (0, 0), **const_kw)
    b_spec = pl.BlockSpec((1, C_pad), lambda i, j: (0, 0), **const_kw)
    out_spec = pl.BlockSpec((Bt, C_pad), lambda i, j: (i, 0))   # resident across j
    return pl.pallas_call(
        kernel,
        out_shape=jax.ShapeDtypeStruct((B, C_pad), jnp.float32),
        grid_spec=pltpu.PrefetchScalarGridSpec(
            num_scalar_prefetch=0,
            grid=(B // Bt, S // St),
            in_specs=feat_specs + attn_specs + [w_spec, b_spec],
            out_specs=out_spec,
            scratch_shapes=[pltpu.VMEM((Bt, K), jnp.float32)],
        ),
        compiler_params=pltpu.CompilerParams(
            dimension_semantics=("parallel", "arbitrary"),
            vmem_limit_bytes=int(vmem_limit),
        ),
        cost_estimate=cost,
    )


def fusion_classifier(features, p_attns, weight, bias, *, max_b_unroll=8):
    """features: list[depth] of (B, S, D); p_attns: list[depth] of (B, S);
       weight: (depth*D, C)   (transpose of PyTorch Linear's (C, depth*D));
       bias:   (C,).  Returns (B, C) float32."""
    depth = len(features)
    B, S, D = features[0].shape
    K = depth * D
    C = weight.shape[1]
    assert weight.shape[0] == K

    # Lane-dense padded class dim (pure plumbing; zeros do not change the result).
    # Weight / bias stay in their native dtype -- no wrapper f32 upcast.
    C_pad = _round_up(C, 128)
    w_pad = jnp.zeros((K, C_pad), weight.dtype).at[:, :C].set(weight)
    b_pad = jnp.zeros((1, C_pad), bias.dtype).at[:, :C].set(bias.reshape(1, C))

    cap, limit, budget = _vmem_budget_bytes()
    Bt, St, fp = _choose_tiles(
        B, S, depth, D, K, C_pad,
        features[0].dtype.itemsize, p_attns[0].dtype.itemsize,
        w_pad.dtype.itemsize, b_pad.dtype.itemsize, budget,
        max_b_unroll=max_b_unroll)
    vmem_limit = limit
    if fp > budget:                       # degenerate shapes: still run (may spill)
        vmem_limit = min(int(cap * 0.9), fp + (8 << 20))

    feat_bytes = sum(int(f.size) * f.dtype.itemsize for f in features)
    attn_bytes = sum(int(a.size) * a.dtype.itemsize for a in p_attns)
    cost = pl.CostEstimate(
        flops=2 * B * S * K + 2 * B * K * C_pad,
        transcendentals=0,
        bytes_accessed=(feat_bytes + attn_bytes
                        + int(w_pad.size) * w_pad.dtype.itemsize
                        + int(b_pad.size) * b_pad.dtype.itemsize
                        + B * C_pad * 4),
    )

    args = (*features, *p_attns, w_pad, b_pad)
    kwargs = dict(depth=depth, B=B, S=S, D=D, K=K, C_pad=C_pad, Bt=Bt, St=St,
                  vmem_limit=vmem_limit, cost=cost)
    try:
        out_padded = _build_call(single_buffer_consts=True, **kwargs)(*args)
    except Exception:
        # pl.Buffered(1) on the grid-invariant weight/bias is a VMEM-only optimization;
        # fall back to default double buffering if this JAX build rejects it.
        out_padded = _build_call(single_buffer_consts=False, **kwargs)(*args)

    return out_padded[:, :C]


# --------------------------------------------------------------------------- reference
def fusion_classifier_ref(features, p_attns, weight, bias):
    """Pure-JAX reference mirroring the PyTorch forward."""
    pooled = [jnp.sum(a[:, :, None].astype(jnp.float32) * f.astype(jnp.float32),
                      axis=-2)
              for f, a in zip(features, p_attns)]
    fused = jnp.concatenate(pooled, axis=-1)                 # (B, depth*D)
    return fused @ weight.astype(jnp.float32) + bias.astype(jnp.float32)


if __name__ == "__main__":
    # Small shapes consistent with the module.
    B, S, D = 2, 8, 32          # batch, seq, per-level feature dim (in_features)
    depth = 2                   # number of fused levels
    C = 10                      # out_features (num classes)

    key = jax.random.PRNGKey(0)
    k_feat, k_attn, k_w, k_b = jax.random.split(key, 4)

    feat_keys = jax.random.split(k_feat, depth)
    attn_keys = jax.random.split(k_attn, depth)
    features = [jax.random.normal(feat_keys[i], (B, S, D), jnp.float32)
                for i in range(depth)]
    # attention weights: softmax over seq so they look like real p_attns
    p_attns = [jax.nn.softmax(jax.random.normal(attn_keys[i], (B, S), jnp.float32),
                              axis=-1)
               for i in range(depth)]

    # Deterministic Linear params (PyTorch Linear has W:(C, depth*D), b:(C,));
    # we store W transposed as (depth*D, C) for the kernel.
    fan_in = depth * D
    bound = 1.0 / (fan_in ** 0.5)
    weight = jax.random.uniform(k_w, (fan_in, C), jnp.float32, -bound, bound)
    bias = jax.random.uniform(k_b, (C,), jnp.float32, -bound, bound)

    out = fusion_classifier(features, p_attns, weight, bias)
    out = jax.block_until_ready(out)

    ref = fusion_classifier_ref(features, p_attns, weight, bias)
    assert out.shape == (B, C)
    assert jnp.allclose(out, ref, atol=1e-4, rtol=1e-4), "mismatch vs reference"

    print("KERNEL_OK")
</pallas_src>

<mosaic_0001>
module attributes {stable_mosaic.version = 11 : i64} {
  func.func @fusion_classifier_kernel(%arg0: i32, %arg1: i32, %arg2: memref<2x8x32xf32, #tpu.memory_space<vmem>>, %arg3: memref<2x8x32xf32, #tpu.memory_space<vmem>>, %arg4: memref<2x8xf32, #tpu.memory_space<vmem>>, %arg5: memref<2x8xf32, #tpu.memory_space<vmem>>, %arg6: memref<64x128xf32, #tpu.memory_space<vmem>>, %arg7: memref<1x128xf32, #tpu.memory_space<vmem>>, %arg8: memref<2x128xf32, #tpu.memory_space<vmem>>, %arg9: memref<2x64xf32, #tpu.memory_space<vmem>>) attributes {dimension_semantics = [#tpu.dimension_semantics<parallel>, #tpu.dimension_semantics<arbitrary>], iteration_bounds = array<i64: 1, 1>, scalar_prefetch = 0 : i64, scratch_operands = 1 : i64, tpu.core_type = #tpu.core_type<tc>, window_params = [{transform_indices = @transform_0, window_bounds = array<i64: 2, 8, 32>}, {transform_indices = @transform_1, window_bounds = array<i64: 2, 8, 32>}, {transform_indices = @transform_2, window_bounds = array<i64: 2, 8>}, {transform_indices = @transform_3, window_bounds = array<i64: 2, 8>}, {pipeline_mode = #tpu.pipeline_mode<synchronous>, transform_indices = @transform_4, window_bounds = array<i64: 64, 128>}, {pipeline_mode = #tpu.pipeline_mode<synchronous>, transform_indices = @transform_5, window_bounds = array<i64: 1, 128>}, {transform_indices = @transform_6, window_bounds = array<i64: 2, 128>}]} {
    %c0_i32 = arith.constant 0 : i32
    %0 = arith.cmpi eq, %arg1, %c0_i32 : i32
    %1 = arith.extui %0 : i1 to i32
    %c0_i32_0 = arith.constant 0 : i32
    %2 = arith.cmpi ne, %1, %c0_i32_0 : i32
    scf.if %2 {
      %cst_39 = arith.constant 0.000000e+00 : f32
      %34 = vector.broadcast %cst_39 : f32 to vector<2x64xf32>
      %c0_40 = arith.constant 0 : index
      %c0_41 = arith.constant 0 : index
      %35 = vector.load %arg9[%c0_40, %c0_41] : memref<2x64xf32, #tpu.memory_space<vmem>>, vector<2x64xf32>
      tpu.vector_store %arg9[%c0_40, %c0_41], %34 {strides = array<i32>} : memref<2x64xf32, #tpu.memory_space<vmem>>, vector<2x64xf32>,
    } else {
    }
    %c0 = arith.constant 0 : index
    %c0_1 = arith.constant 0 : index
    %3 = vector.load %arg4[%c0, %c0_1] : memref<2x8xf32, #tpu.memory_space<vmem>>, vector<1x8xf32>
    %c0_2 = arith.constant 0 : index
    %c0_3 = arith.constant 0 : index
    %c0_4 = arith.constant 0 : index
    %4 = vector.load %arg2[%c0_2, %c0_3, %c0_4] : memref<2x8x32xf32, #tpu.memory_space<vmem>>, vector<1x8x32xf32>
    %5 = vector.shape_cast %4 : vector<1x8x32xf32> to vector<8x32xf32>
    %cst = arith.constant dense<0.000000e+00> : vector<1x32xf32>
    %6 = tpu.matmul %3, %5, %cst {dimension_numbers = #tpu.dot_dimension_numbers<[1], [0], [0], [1], [0, 0, 1, 1], [], []>} : vector<1x8xf32>, vector<8x32xf32>, vector<1x32xf32> -> vector<1x32xf32>
    %c0_5 = arith.constant 0 : index
    %c0_6 = arith.constant 0 : index
    %7 = vector.load %arg9[%c0_5, %c0_6] : memref<2x64xf32, #tpu.memory_space<vmem>>, vector<1x32xf32>
    %8 = arith.addf %7, %6 : vector<1x32xf32>
    %c0_7 = arith.constant 0 : index
    %c0_8 = arith.constant 0 : index
    %9 = vector.load %arg9[%c0_7, %c0_8] : memref<2x64xf32, #tpu.memory_space<vmem>>, vector<1x32xf32>
    tpu.vector_store %arg9[%c0_7, %c0_8], %8 {strides = array<i32>} : memref<2x64xf32, #tpu.memory_space<vmem>>, vector<1x32xf32>,
    %c0_9 = arith.constant 0 : index
    %c0_10 = arith.constant 0 : index
    %10 = vector.load %arg5[%c0_9, %c0_10] : memref<2x8xf32, #tpu.memory_space<vmem>>, vector<1x8xf32>
    %c0_11 = arith.constant 0 : index
    %c0_12 = arith.constant 0 : index
    %c0_13 = arith.constant 0 : index
    %11 = vector.load %arg3[%c0_11, %c0_12, %c0_13] : memref<2x8x32xf32, #tpu.memory_space<vmem>>, vector<1x8x32xf32>
    %12 = vector.shape_cast %11 : vector<1x8x32xf32> to vector<8x32xf32>
    %cst_14 = arith.constant dense<0.000000e+00> : vector<1x32xf32>
    %13 = tpu.matmul %10, %12, %cst_14 {dimension_numbers = #tpu.dot_dimension_numbers<[1], [0], [0], [1], [0, 0, 1, 1], [], []>} : vector<1x8xf32>, vector<8x32xf32>, vector<1x32xf32> -> vector<1x32xf32>
    %c0_15 = arith.constant 0 : index
    %c32 = arith.constant 32 : index
    %14 = vector.load %arg9[%c0_15, %c32] : memref<2x64xf32, #tpu.memory_space<vmem>>, vector<1x32xf32>
    %15 = arith.addf %14, %13 : vector<1x32xf32>
    %c0_16 = arith.constant 0 : index
    %c32_17 = arith.constant 32 : index
    %16 = vector.load %arg9[%c0_16, %c32_17] : memref<2x64xf32, #tpu.memory_space<vmem>>, vector<1x32xf32>
    tpu.vector_store %arg9[%c0_16, %c32_17], %15 {strides = array<i32>} : memref<2x64xf32, #tpu.memory_space<vmem>>, vector<1x32xf32>,
    %c1 = arith.constant 1 : index
    %c0_18 = arith.constant 0 : index
    %17 = vector.load %arg4[%c1, %c0_18] : memref<2x8xf32, #tpu.memory_space<vmem>>, vector<1x8xf32>
    %c1_19 = arith.constant 1 : index
    %c0_20 = arith.constant 0 : index
    %c0_21 = arith.constant 0 : index
    %18 = vector.load %arg2[%c1_19, %c0_20, %c0_21] : memref<2x8x32xf32, #tpu.memory_space<vmem>>, vector<1x8x32xf32>
    %19 = vector.shape_cast %18 : vector<1x8x32xf32> to vector<8x32xf32>
    %cst_22 = arith.constant dense<0.000000e+00> : vector<1x32xf32>
    %20 = tpu.matmul %17, %19, %cst_22 {dimension_numbers = #tpu.dot_dimension_numbers<[1], [0], [0], [1], [0, 0, 1, 1], [], []>} : vector<1x8xf32>, vector<8x32xf32>, vector<1x32xf32> -> vector<1x32xf32>
    %c1_23 = arith.constant 1 : index
    %c0_24 = arith.constant 0 : index
    %21 = vector.load %arg9[%c1_23, %c0_24] : memref<2x64xf32, #tpu.memory_space<vmem>>, vector<1x32xf32>
    %22 = arith.addf %21, %20 : vector<1x32xf32>
    %c1_25 = arith.constant 1 : index
    %c0_26 = arith.constant 0 : index
    %23 = vector.load %arg9[%c1_25, %c0_26] : memref<2x64xf32, #tpu.memory_space<vmem>>, vector<1x32xf32>
    tpu.vector_store %arg9[%c1_25, %c0_26], %22 {strides = array<i32>} : memref<2x64xf32, #tpu.memory_space<vmem>>, vector<1x32xf32>,
    %c1_27 = arith.constant 1 : index
    %c0_28 = arith.constant 0 : index
    %24 = vector.load %arg5[%c1_27, %c0_28] : memref<2x8xf32, #tpu.memory_space<vmem>>, vector<1x8xf32>
    %c1_29 = arith.constant 1 : index
    %c0_30 = arith.constant 0 : index
    %c0_31 = arith.constant 0 : index
    %25 = vector.load %arg3[%c1_29, %c0_30, %c0_31] : memref<2x8x32xf32, #tpu.memory_space<vmem>>, vector<1x8x32xf32>
    %26 = vector.shape_cast %25 : vector<1x8x32xf32> to vector<8x32xf32>
    %cst_32 = arith.constant dense<0.000000e+00> : vector<1x32xf32>
    %27 = tpu.matmul %24, %26, %cst_32 {dimension_numbers = #tpu.dot_dimension_numbers<[1], [0], [0], [1], [0, 0, 1, 1], [], []>} : vector<1x8xf32>, vector<8x32xf32>, vector<1x32xf32> -> vector<1x32xf32>
    %c1_33 = arith.constant 1 : index
    %c32_34 = arith.constant 32 : index
    %28 = vector.load %arg9[%c1_33, %c32_34] : memref<2x64xf32, #tpu.memory_space<vmem>>, vector<1x32xf32>
    %29 = arith.addf %28, %27 : vector<1x32xf32>
    %c1_35 = arith.constant 1 : index
    %c32_36 = arith.constant 32 : index
    %30 = vector.load %arg9[%c1_35, %c32_36] : memref<2x64xf32, #tpu.memory_space<vmem>>, vector<1x32xf32>
    tpu.vector_store %arg9[%c1_35, %c32_36], %29 {strides = array<i32>} : memref<2x64xf32, #tpu.memory_space<vmem>>, vector<1x32xf32>,
    %c0_i32_37 = arith.constant 0 : i32
    %31 = arith.cmpi eq, %arg1, %c0_i32_37 : i32
    %32 = arith.extui %31 : i1 to i32
    %c0_i32_38 = arith.constant 0 : i32
    %33 = arith.cmpi ne, %32, %c0_i32_38 : i32
    scf.if %33 {
      %c0_39 = arith.constant 0 : index
      %c0_40 = arith.constant 0 : index
      %34 = vector.load %arg9[%c0_39, %c0_40] : memref<2x64xf32, #tpu.memory_space<vmem>>, vector<2x64xf32>
      %c0_41 = arith.constant 0 : index
      %c0_42 = arith.constant 0 : index
      %35 = vector.load %arg6[%c0_41, %c0_42] : memref<64x128xf32, #tpu.memory_space<vmem>>, vector<64x128xf32>
      %cst_43 = arith.constant dense<0.000000e+00> : vector<2x128xf32>
      %36 = tpu.matmul %34, %35, %cst_43 {dimension_numbers = #tpu.dot_dimension_numbers<[1], [0], [0], [1], [0, 0, 1, 1], [], []>} : vector<2x64xf32>, vector<64x128xf32>, vector<2x128xf32> -> vector<2x128xf32>
      %c0_44 = arith.constant 0 : index
      %c0_45 = arith.constant 0 : index
      %37 = vector.load %arg7[%c0_44, %c0_45] : memref<1x128xf32, #tpu.memory_space<vmem>>, vector<1x128xf32>
      %38 = vector.broadcast %37 : vector<1x128xf32> to vector<2x128xf32>
      %39 = arith.addf %36, %38 : vector<2x128xf32>
      %c0_46 = arith.constant 0 : index
      %c0_47 = arith.constant 0 : index
      %40 = vector.load %arg8[%c0_46, %c0_47] : memref<2x128xf32, #tpu.memory_space<vmem>>, vector<2x128xf32>
      tpu.vector_store %arg8[%c0_46, %c0_47], %39 {strides = array<i32>} : memref<2x128xf32, #tpu.memory_space<vmem>>, vector<2x128xf32>,
    } else {
    }
    return
  }
  func.func @transform_0(%arg0: i32, %arg1: i32) -> (i32, i32, i32) {
    %c0_i32 = arith.constant 0 : i32
    %c0_i32_0 = arith.constant 0 : i32
    return %arg0, %arg1, %c0_i32 : i32, i32, i32
  }
  func.func @transform_1(%arg0: i32, %arg1: i32) -> (i32, i32, i32) {
    %c0_i32 = arith.constant 0 : i32
    %c0_i32_0 = arith.constant 0 : i32
    return %arg0, %arg1, %c0_i32 : i32, i32, i32
  }
  func.func @transform_2(%arg0: i32, %arg1: i32) -> (i32, i32) {
    %c0_i32 = arith.constant 0 : i32
    return %arg0, %arg1 : i32, i32
  }
  func.func @transform_3(%arg0: i32, %arg1: i32) -> (i32, i32) {
    %c0_i32 = arith.constant 0 : i32
    return %arg0, %arg1 : i32, i32
  }
  func.func @transform_4(%arg0: i32, %arg1: i32) -> (i32, i32) {
    %c0_i32 = arith.constant 0 : i32
    %c0_i32_0 = arith.constant 0 : i32
    %c0_i32_1 = arith.constant 0 : i32
    return %c0_i32, %c0_i32_0 : i32, i32
  }
  func.func @transform_5(%arg0: i32, %arg1: i32) -> (i32, i32) {
    %c0_i32 = arith.constant 0 : i32
    %c0_i32_0 = arith.constant 0 : i32
    %c0_i32_1 = arith.constant 0 : i32
    return %c0_i32, %c0_i32_0 : i32, i32
  }
  func.func @transform_6(%arg0: i32, %arg1: i32) -> (i32, i32) {
    %c0_i32 = arith.constant 0 : i32
    %c0_i32_0 = arith.constant 0 : i32
    return %arg0, %c0_i32 : i32, i32
  }
}

module attributes {stable_mosaic.version = 11 : i64} {
  func.func @fusion_classifier_kernel(%arg0: i32, %arg1: i32, %arg2: memref<2x8x32xf32, #tpu.memory_space<vmem>>, %arg3: memref<2x8x32xf32, #tpu.memory_space<vmem>>, %arg4: memref<2x8xf32, #tpu.memory_space<vmem>>, %arg5: memref<2x8xf32, #tpu.memory_space<vmem>>, %arg6: memref<64x128xf32, #tpu.memory_space<vmem>>, %arg7: memref<1x128xf32, #tpu.memory_space<vmem>>, %arg8: memref<2x128xf32, #tpu.memory_space<vmem>>, %arg9: memref<2x64xf32, #tpu.memory_space<vmem>>) attributes {dimension_semantics = [#tpu.dimension_semantics<parallel>, #tpu.dimension_semantics<arbitrary>], iteration_bounds = array<i64: 1, 1>, scalar_prefetch = 0 : i64, scratch_operands = 1 : i64, tpu.core_type = #tpu.core_type<tc>, window_params = [{transform_indices = @transform_0, window_bounds = array<i64: 2, 8, 32>}, {transform_indices = @transform_1, window_bounds = array<i64: 2, 8, 32>}, {transform_indices = @transform_2, window_bounds = array<i64: 2, 8>}, {transform_indices = @transform_3, window_bounds = array<i64: 2, 8>}, {pipeline_mode = #tpu.pipeline_mode<synchronous>, transform_indices = @transform_4, window_bounds = array<i64: 64, 128>}, {pipeline_mode = #tpu.pipeline_mode<synchronous>, transform_indices = @transform_5, window_bounds = array<i64: 1, 128>}, {transform_indices = @transform_6, window_bounds = array<i64: 2, 128>}]} {
    %c0_i32 = arith.constant 0 : i32
    %0 = arith.cmpi eq, %arg1, %c0_i32 : i32
    %1 = arith.extui %0 : i1 to i32
    %c0_i32_0 = arith.constant 0 : i32
    %2 = arith.cmpi ne, %1, %c0_i32_0 : i32
    scf.if %2 {
      %cst_39 = arith.constant 0.000000e+00 : f32
      %34 = vector.broadcast %cst_39 : f32 to vector<2x64xf32>
      %c0_40 = arith.constant 0 : index
      %c0_41 = arith.constant 0 : index
      %35 = vector.load %arg9[%c0_40, %c0_41] : memref<2x64xf32, #tpu.memory_space<vmem>>, vector<2x64xf32>
      tpu.vector_store %arg9[%c0_40, %c0_41], %34 {strides = array<i32>} : memref<2x64xf32, #tpu.memory_space<vmem>>, vector<2x64xf32>,
    } else {
    }
    %c0 = arith.constant 0 : index
    %c0_1 = arith.constant 0 : index
    %3 = vector.load %arg4[%c0, %c0_1] : memref<2x8xf32, #tpu.memory_space<vmem>>, vector<1x8xf32>
    %c0_2 = arith.constant 0 : index
    %c0_3 = arith.constant 0 : index
    %c0_4 = arith.constant 0 : index
    %4 = vector.load %arg2[%c0_2, %c0_3, %c0_4] : memref<2x8x32xf32, #tpu.memory_space<vmem>>, vector<1x8x32xf32>
    %5 = vector.shape_cast %4 : vector<1x8x32xf32> to vector<8x32xf32>
    %cst = arith.constant dense<0.000000e+00> : vector<1x32xf32>
    %6 = tpu.matmul %3, %5, %cst {dimension_numbers = #tpu.dot_dimension_numbers<[1], [0], [0], [1], [0, 0, 1, 1], [], []>} : vector<1x8xf32>, vector<8x32xf32>, vector<1x32xf32> -> vector<1x32xf32>
    %c0_5 = arith.constant 0 : index
    %c0_6 = arith.constant 0 : index
    %7 = vector.load %arg9[%c0_5, %c0_6] : memref<2x64xf32, #tpu.memory_space<vmem>>, vector<1x32xf32>
    %8 = arith.addf %7, %6 : vector<1x32xf32>
    %c0_7 = arith.constant 0 : index
    %c0_8 = arith.constant 0 : index
    %9 = vector.load %arg9[%c0_7, %c0_8] : memref<2x64xf32, #tpu.memory_space<vmem>>, vector<1x32xf32>
    tpu.vector_store %arg9[%c0_7, %c0_8], %8 {strides = array<i32>} : memref<2x64xf32, #tpu.memory_space<vmem>>, vector<1x32xf32>,
    %c0_9 = arith.constant 0 : index
    %c0_10 = arith.constant 0 : index
    %10 = vector.load %arg5[%c0_9, %c0_10] : memref<2x8xf32, #tpu.memory_space<vmem>>, vector<1x8xf32>
    %c0_11 = arith.constant 0 : index
    %c0_12 = arith.constant 0 : index
    %c0_13 = arith.constant 0 : index
    %11 = vector.load %arg3[%c0_11, %c0_12, %c0_13] : memref<2x8x32xf32, #tpu.memory_space<vmem>>, vector<1x8x32xf32>
    %12 = vector.shape_cast %11 : vector<1x8x32xf32> to vector<8x32xf32>
    %cst_14 = arith.constant dense<0.000000e+00> : vector<1x32xf32>
    %13 = tpu.matmul %10, %12, %cst_14 {dimension_numbers = #tpu.dot_dimension_numbers<[1], [0], [0], [1], [0, 0, 1, 1], [], []>} : vector<1x8xf32>, vector<8x32xf32>, vector<1x32xf32> -> vector<1x32xf32>
    %c0_15 = arith.constant 0 : index
    %c32 = arith.constant 32 : index
    %14 = vector.load %arg9[%c0_15, %c32] : memref<2x64xf32, #tpu.memory_space<vmem>>, vector<1x32xf32>
    %15 = arith.addf %14, %13 : vector<1x32xf32>
    %c0_16 = arith.constant 0 : index
    %c32_17 = arith.constant 32 : index
    %16 = vector.load %arg9[%c0_16, %c32_17] : memref<2x64xf32, #tpu.memory_space<vmem>>, vector<1x32xf32>
    tpu.vector_store %arg9[%c0_16, %c32_17], %15 {strides = array<i32>} : memref<2x64xf32, #tpu.memory_space<vmem>>, vector<1x32xf32>,
    %c1 = arith.constant 1 : index
    %c0_18 = arith.constant 0 : index
    %17 = vector.load %arg4[%c1, %c0_18] : memref<2x8xf32, #tpu.memory_space<vmem>>, vector<1x8xf32>
    %c1_19 = arith.constant 1 : index
    %c0_20 = arith.constant 0 : index
    %c0_21 = arith.constant 0 : index
    %18 = vector.load %arg2[%c1_19, %c0_20, %c0_21] : memref<2x8x32xf32, #tpu.memory_space<vmem>>, vector<1x8x32xf32>
    %19 = vector.shape_cast %18 : vector<1x8x32xf32> to vector<8x32xf32>
    %cst_22 = arith.constant dense<0.000000e+00> : vector<1x32xf32>
    %20 = tpu.matmul %17, %19, %cst_22 {dimension_numbers = #tpu.dot_dimension_numbers<[1], [0], [0], [1], [0, 0, 1, 1], [], []>} : vector<1x8xf32>, vector<8x32xf32>, vector<1x32xf32> -> vector<1x32xf32>
    %c1_23 = arith.constant 1 : index
    %c0_24 = arith.constant 0 : index
    %21 = vector.load %arg9[%c1_23, %c0_24] : memref<2x64xf32, #tpu.memory_space<vmem>>, vector<1x32xf32>
    %22 = arith.addf %21, %20 : vector<1x32xf32>
    %c1_25 = arith.constant 1 : index
    %c0_26 = arith.constant 0 : index
    %23 = vector.load %arg9[%c1_25, %c0_26] : memref<2x64xf32, #tpu.memory_space<vmem>>, vector<1x32xf32>
    tpu.vector_store %arg9[%c1_25, %c0_26], %22 {strides = array<i32>} : memref<2x64xf32, #tpu.memory_space<vmem>>, vector<1x32xf32>,
    %c1_27 = arith.constant 1 : index
    %c0_28 = arith.constant 0 : index
    %24 = vector.load %arg5[%c1_27, %c0_28] : memref<2x8xf32, #tpu.memory_space<vmem>>, vector<1x8xf32>
    %c1_29 = arith.constant 1 : index
    %c0_30 = arith.constant 0 : index
    %c0_31 = arith.constant 0 : index
    %25 = vector.load %arg3[%c1_29, %c0_30, %c0_31] : memref<2x8x32xf32, #tpu.memory_space<vmem>>, vector<1x8x32xf32>
    %26 = vector.shape_cast %25 : vector<1x8x32xf32> to vector<8x32xf32>
    %cst_32 = arith.constant dense<0.000000e+00> : vector<1x32xf32>
    %27 = tpu.matmul %24, %26, %cst_32 {dimension_numbers = #tpu.dot_dimension_numbers<[1], [0], [0], [1], [0, 0, 1, 1], [], []>} : vector<1x8xf32>, vector<8x32xf32>, vector<1x32xf32> -> vector<1x32xf32>
    %c1_33 = arith.constant 1 : index
    %c32_34 = arith.constant 32 : index
    %28 = vector.load %arg9[%c1_33, %c32_34] : memref<2x64xf32, #tpu.memory_space<vmem>>, vector<1x32xf32>
    %29 = arith.addf %28, %27 : vector<1x32xf32>
    %c1_35 = arith.constant 1 : index
    %c32_36 = arith.constant 32 : index
    %30 = vector.load %arg9[%c1_35, %c32_36] : memref<2x64xf32, #tpu.memory_space<vmem>>, vector<1x32xf32>
    tpu.vector_store %arg9[%c1_35, %c32_36], %29 {strides = array<i32>} : memref<2x64xf32, #tpu.memory_space<vmem>>, vector<1x32xf32>,
    %c0_i32_37 = arith.constant 0 : i32
    %31 = arith.cmpi eq, %arg1, %c0_i32_37 : i32
    %32 = arith.extui %31 : i1 to i32
    %c0_i32_38 = arith.constant 0 : i32
    %33 = arith.cmpi ne, %32, %c0_i32_38 : i32
    scf.if %33 {
      %c0_39 = arith.constant 0 : index
      %c0_40 = arith.constant 0 : index
      %34 = vector.load %arg9[%c0_39, %c0_40] : memref<2x64xf32, #tpu.memory_space<vmem>>, vector<2x64xf32>
      %c0_41 = arith.constant 0 : index
      %c0_42 = arith.constant 0 : index
      %35 = vector.load %arg6[%c0_41, %c0_42] : memref<64x128xf32, #tpu.memory_space<vmem>>, vector<64x128xf32>
      %cst_43 = arith.constant dense<0.000000e+00> : vector<2x128xf32>
      %36 = tpu.matmul %34, %35, %cst_43 {dimension_numbers = #tpu.dot_dimension_numbers<[1], [0], [0], [1], [0, 0, 1, 1], [], []>} : vector<2x64xf32>, vector<64x128xf32>, vector<2x128xf32> -> vector<2x128xf32>
      %c0_44 = arith.constant 0 : index
      %c0_45 = arith.constant 0 : index
      %37 = vector.load %arg7[%c0_44, %c0_45] : memref<1x128xf32, #tpu.memory_space<vmem>>, vector<1x128xf32>
      %38 = vector.broadcast %37 : vector<1x128xf32> to vector<2x128xf32>
      %39 = arith.addf %36, %38 : vector<2x128xf32>
      %c0_46 = arith.constant 0 : index
      %c0_47 = arith.constant 0 : index
      %40 = vector.load %arg8[%c0_46, %c0_47] : memref<2x128xf32, #tpu.memory_space<vmem>>, vector<2x128xf32>
      tpu.vector_store %arg8[%c0_46, %c0_47], %39 {strides = array<i32>} : memref<2x128xf32, #tpu.memory_space<vmem>>, vector<2x128xf32>,
    } else {
    }
    return
  }
  func.func @transform_0(%arg0: i32, %arg1: i32) -> (i32, i32, i32) {
    %c0_i32 = arith.constant 0 : i32
    %c0_i32_0 = arith.constant 0 : i32
    return %arg0, %arg1, %c0_i32 : i32, i32, i32
  }
  func.func @transform_1(%arg0: i32, %arg1: i32) -> (i32, i32, i32) {
    %c0_i32 = arith.constant 0 : i32
    %c0_i32_0 = arith.constant 0 : i32
    return %arg0, %arg1, %c0_i32 : i32, i32, i32
  }
  func.func @transform_2(%arg0: i32, %arg1: i32) -> (i32, i32) {
    %c0_i32 = arith.constant 0 : i32
    return %arg0, %arg1 : i32, i32
  }
  func.func @transform_3(%arg0: i32, %arg1: i32) -> (i32, i32) {
    %c0_i32 = arith.constant 0 : i32
    return %arg0, %arg1 : i32, i32
  }
  func.func @transform_4(%arg0: i32, %arg1: i32) -> (i32, i32) {
    %c0_i32 = arith.constant 0 : i32
    %c0_i32_0 = arith.constant 0 : i32
    %c0_i32_1 = arith.constant 0 : i32
    return %c0_i32, %c0_i32_0 : i32, i32
  }
  func.func @transform_5(%arg0: i32, %arg1: i32) -> (i32, i32) {
    %c0_i32 = arith.constant 0 : i32
    %c0_i32_0 = arith.constant 0 : i32
    %c0_i32_1 = arith.constant 0 : i32
    return %c0_i32, %c0_i32_0 : i32, i32
  }
  func.func @transform_6(%arg0: i32, %arg1: i32) -> (i32, i32) {
    %c0_i32 = arith.constant 0 : i32
    %c0_i32_0 = arith.constant 0 : i32
    return %arg0, %c0_i32 : i32, i32
  }
}

</mosaic_0001>

<llo_original>
// kernel: tpu_custom_call.1
$region0: #{tpu_custom_call.1}
  #allocation0 [shape = 'u32[]', space=smem, size = 0x4, offset = 0x4, fixed_abs, tag = 'smem constant byte address 0x4 - core index']
  #allocation1 [shape = 'u32[144,128]{1,0:T(1,128)}', space=vmem, size = 0x12000, scoped, tag = 'internal scratch']
  #allocation2 [shape = 'f32[2,64]{1,0:T(2,128)}', space=vmem, size = 0x400, scoped, tag = 'scratch operand']
  %s0 = inlined_call_operand.hbm [shape: f32[2,8,32], index: 0, kind: input, shape index: {}]
  %s1 = inlined_call_operand.hbm [shape: f32[2,8,32], index: 1, kind: input, shape index: {}]
  %s2 = inlined_call_operand.vmem [shape: f32[2,8], index: 2, kind: input, shape index: {}]
  %s3 = inlined_call_operand.vmem [shape: f32[2,8], index: 3, kind: input, shape index: {}]
  %s4 = inlined_call_operand.hbm [shape: f32[64,128], index: 4, kind: input, shape index: {}]
  %s5 = inlined_call_operand.vmem [shape: f32[1,128], index: 5, kind: input, shape index: {}]
  %s6 = inlined_call_operand.hbm [shape: f32[2,128], index: 6, kind: output, shape index: {}]
  %s7 = sld [smem:[#allocation0]]
  $region54: #{tpu_custom_call.1} parent=0
    _
  %s9 = ssub.s32 1, %s7
  %s10 = scalar_select 0, %s9, %s7
  $region1: #{tpu_custom_call.1} parent=0
    #allocation3 [shape = 'u8[8192]{0}', space=vmem, size = 0x2000, scoped, tag = 'input window, operand 0, single buffered']
    #allocation4 [shape = 's32[1]{0}', space=sflag, size = 0x4, scoped, tag = 'scoped memory for tpu_custom_call.1']
    #allocation5 [shape = 's32[1]{0}', space=sflag, size = 0x4, scoped, tag = 'scoped memory for tpu_custom_call.1']
    #allocation6 [shape = 'u8[8192]{0}', space=vmem, size = 0x2000, scoped, tag = 'input window, operand 1, single buffered']
    #allocation7 [shape = 's32[1]{0}', space=sflag, size = 0x4, scoped, tag = 'scoped memory for tpu_custom_call.1']
    #allocation8 [shape = 'u8[32768]{0}', space=vmem, size = 0x8000, scoped, tag = 'input window, operand 4, single buffered']
    #allocation9 [shape = 'u8[1024]{0}', space=vmem, size = 0x400, scoped, tag = 'output window, operand 0, single buffered']
    %11 = vsyncpa [#allocation4], 0
    %12 = vsyncpa [#allocation7], 0
    %13 = vsyncpa [#allocation5], 0
    // Predicated region
    $region2: #{tpu_custom_call.1} parent=1 // pred_check
      _
    $region3: #{tpu_custom_call.1} parent=1 // pred_check_branch
      %15 = sbr.rel (0) target = $region5
    $region4: #{tpu_custom_call.1} parent=1 // pred_region
      %s17 = ssub.s32 256, 256
      %18 = vsyncadd [#allocation4], %s17
      %s19 = sshll.u32 [#allocation3], 4
      %s20 = int_to_ptr.vmem [resolvable:$true] %s19
      %25 = dma.hbm_to_vmem [thread:$0]  %s0, 256, %s20, [#allocation4], 128, 128, 8
    $region5: #{tpu_custom_call.1} parent=1 // pred_fallthru
      _
    // Predicated region
    $region6: #{tpu_custom_call.1} parent=1 // pred_check
      _
    $region7: #{tpu_custom_call.1} parent=1 // pred_check_branch
      %27 = sbr.rel (0) target = $region9
    $region8: #{tpu_custom_call.1} parent=1 // pred_region
      %s29 = ssub.s32 256, 256
      %30 = vsyncadd [#allocation7], %s29
      %s31 = sshll.u32 [#allocation6], 4
      %s32 = int_to_ptr.vmem [resolvable:$true] %s31
      %37 = dma.hbm_to_vmem [thread:$0]  %s1, 256, %s32, [#allocation7], 128, 128, 8
    $region9: #{tpu_custom_call.1} parent=1 // pred_fallthru
      _
    // Predicated region
    $region10: #{tpu_custom_call.1} parent=1 // pred_check
      _
    $region11: #{tpu_custom_call.1} parent=1 // pred_check_branch
      %39 = sbr.rel (0) target = $region13
    $region12: #{tpu_custom_call.1} parent=1 // pred_region
      _
    $region13: #{tpu_custom_call.1} parent=1 // pred_fallthru
      _
    // Predicated region
    $region14: #{tpu_custom_call.1} parent=1 // pred_check
      _
    $region15: #{tpu_custom_call.1} parent=1 // pred_check_branch
      %41 = sbr.rel (0) target = $region17
    $region16: #{tpu_custom_call.1} parent=1 // pred_region
      _
    $region17: #{tpu_custom_call.1} parent=1 // pred_fallthru
      _
    // Predicated region
    $region18: #{tpu_custom_call.1} parent=1 // pred_check
      _
    $region19: #{tpu_custom_call.1} parent=1 // pred_check_branch
      %43 = sbr.rel (0) target = $region21
    $region20: #{tpu_custom_call.1} parent=1 // pred_region
      %s45 = ssub.s32 1024, 1024
      %46 = vsyncadd [#allocation7], %s45
      %s47 = sshll.u32 [#allocation8], 4
      %s48 = int_to_ptr.vmem [resolvable:$true] %s47
      %53 = dma.hbm_to_vmem [thread:$0]  %s4, 1024, %s48, [#allocation7], 128, 128, 8
    $region21: #{tpu_custom_call.1} parent=1 // pred_fallthru
      _
    // Predicated region
    $region22: #{tpu_custom_call.1} parent=1 // pred_check
      _
    $region23: #{tpu_custom_call.1} parent=1 // pred_check_branch
      %55 = sbr.rel (0) target = $region25
    $region24: #{tpu_custom_call.1} parent=1 // pred_region
      _
    $region25: #{tpu_custom_call.1} parent=1 // pred_fallthru
      _
    // Predicated region
    $region26: #{tpu_custom_call.1} parent=1 // pred_check
      _
    $region27: #{tpu_custom_call.1} parent=1 // pred_check_branch
      %57 = sbr.rel (0) target = $region29
    $region28: #{tpu_custom_call.1} parent=1 // pred_region
      %58 = dma.done [#allocation4], 256
    $region29: #{tpu_custom_call.1} parent=1 // pred_fallthru
      _
    // Predicated region
    $region30: #{tpu_custom_call.1} parent=1 // pred_check
      _
    $region31: #{tpu_custom_call.1} parent=1 // pred_check_branch
      %60 = sbr.rel (0) target = $region33
    $region32: #{tpu_custom_call.1} parent=1 // pred_region
      %61 = dma.done [#allocation7], 256
    $region33: #{tpu_custom_call.1} parent=1 // pred_fallthru
      _
    // Predicated region
    $region34: #{tpu_custom_call.1} parent=1 // pred_check
      _
    $region35: #{tpu_custom_call.1} parent=1 // pred_check_branch
      %63 = sbr.rel (0) target = $region37
    $region36: #{tpu_custom_call.1} parent=1 // pred_region
      %64 = dma.done [#allocation7], 1024
    $region37: #{tpu_custom_call.1} parent=1 // pred_fallthru
      _
    %p65 = scmp.eq.s32.totalorder 0, 0
    // Predicated region
    $region38: #{tpu_custom_call.1} parent=1 // pred_check
      %p66 = pneg %p65
    $region39: #{tpu_custom_call.1} parent=1 // pred_check_branch
      %68 = sbr.rel (%p66) target = $region41
    $region40: #{tpu_custom_call.1} parent=1 // pred_region
      %vm69 = vcmask 517120
      %70 = vst.msk [vmem:[#allocation2] sm:$0x3] %vm69, 0.0
    $region41: #{tpu_custom_call.1} parent=1 // pred_fallthru
      _
    %v71 = vld [vmem:[%s2] sm:$0x1]
    %v72 = vld [vmem:[#allocation3] sm:$0xff]
    %vm73 = vcmask 64512
    %v75 = vsel %vm73, %v71, 0
    %77 = vmatprep.subr.mxu0 0.0
    %78 = vmatpush1.msra.mxu0 %v72
    %79 = vmatprep.subr.mxu0 0.0
    %80 = vmatpush1.msra.mxu0 0.0
    %81 = vmatprep.subr.mxu0 0.0
    %82 = vmatpush1.msra.mxu0 0.0
    %83 = vmatprep.subr.mxu0 0.0
    %84 = vmatpush1.msra.mxu0 0.0
    %85 = vmatprep.subr.mxu0 0.0
    %86 = vmatpush1.msra.mxu0 0.0
    %87 = vmatprep.subr.mxu0 0.0
    %88 = vmatpush1.msra.mxu0 0.0
    %89 = vmatprep.subr.mxu0 0.0
    %90 = vmatpush1.msra.mxu0 0.0
    %91 = vmatprep.subr.mxu0 0.0
    %92 = vmatpush1.msra.mxu0 0.0
    %93 = vmatprep.subr.mxu0 0.0
    %94 = vmatpush1.msra.mxu0 0.0
    %95 = vmatprep.subr.mxu0 0.0
    %96 = vmatpush1.msra.mxu0 0.0
    %97 = vmatprep.subr.mxu0 0.0
    %98 = vmatpush1.msra.mxu0 0.0
    %99 = vmatprep.subr.mxu0 0.0
    %100 = vmatpush1.msra.mxu0 0.0
    %101 = vmatprep.subr.mxu0 0.0
    %102 = vmatpush1.msra.mxu0 0.0
    %103 = vmatprep.subr.mxu0 0.0
    %104 = vmatpush1.msra.mxu0 0.0
    %105 = vmatprep.subr.mxu0 0.0
    %106 = vmatpush1.msra.mxu0 0.0
    %107 = vmatprep.subr.mxu0 0.0
    %108 = vmatpush1.msra.mxu0 0.0
    %109 = vmatprep.subr.mxu0 0.0
    %110 = vmatpush1.msra.mxu0 0.0
    %111 = vmatprep.subr.mxu0 0.0
    %112 = vmatpush1.msra.mxu0 0.0
    %113 = vmatprep.subr.mxu0 0.0
    %114 = vmatpush1.msra.mxu0 0.0
    %115 = vmatprep.subr.mxu0 0.0
    %116 = vmatpush1.msra.mxu0 0.0
    %117 = vmatprep.subr.mxu0 0.0
    %118 = vmatpush1.msra.mxu0 0.0
    %119 = vmatprep.subr.mxu0 0.0
    %120 = vmatpush1.msra.mxu0 0.0
    %121 = vmatprep.subr.mxu0 0.0
    %122 = vmatpush1.msra.mxu0 0.0
    %123 = vmatprep.subr.mxu0 0.0
    %124 = vmatpush1.msra.mxu0 0.0
    %125 = vmatprep.subr.mxu0 0.0
    %126 = vmatpush1.msra.mxu0 0.0
    %127 = vmatprep.subr.mxu0 0.0
    %128 = vmatpush1.msra.mxu0 0.0
    %129 = vmatprep.subr.mxu0 0.0
    %130 = vmatpush1.msra.mxu0 0.0
    %131 = vmatprep.subr.mxu0 0.0
    %132 = vmatpush1.msra.mxu0 0.0
    %133 = vmatprep.subr.mxu0 0.0
    %134 = vmatpush1.msra.mxu0 0.0
    %135 = vmatprep.subr.mxu0 0.0
    %136 = vmatpush1.msra.mxu0 0.0
    %137 = vmatprep.subr.mxu0 0.0
    %138 = vmatpush1.msra.mxu0 0.0
    %139 = vmatprep.subr.mxu0 0.0
    %140 = vmatpush1.msra.mxu0 0.0
    %141 = vmatprep.mubr.f32.mxu0 0.0
    %142 = vmatmul.mubr.f32.gmra.mrb[0].mxu0 %v75
    %v143 = vpop.f32.mrb[0].mxu0
    %v144 = vadd.f32 0.0, %v143
    %v145 = vpop.f32.mrb[0].mxu0
    %146 = vdwg.mxu0
    %v147 = vld [vmem:[#allocation2] sm:$0x1]
    %v148 = vadd.f32 %v147, %v144
    %vm149 = vcmask 253952
    %150 = vst.msk [vmem:[#allocation2] sm:$0x1] %vm149, %v148
    %v151 = vld [vmem:[%s3] sm:$0x1]
    %v152 = vld [vmem:[#allocation6] sm:$0xff]
    %v154 = vsel %vm73, %v151, 0
    %156 = vmatprep.subr.mxu0 0.0
    %157 = vmatpush1.msra.mxu0 %v152
    %158 = vmatprep.subr.mxu0 0.0
    %159 = vmatpush1.msra.mxu0 0.0
    %160 = vmatprep.subr.mxu0 0.0
    %161 = vmatpush1.msra.mxu0 0.0
    %162 = vmatprep.subr.mxu0 0.0
    %163 = vmatpush1.msra.mxu0 0.0
    %164 = vmatprep.subr.mxu0 0.0
    %165 = vmatpush1.msra.mxu0 0.0
    %166 = vmatprep.subr.mxu0 0.0
    %167 = vmatpush1.msra.mxu0 0.0
    %168 = vmatprep.subr.mxu0 0.0
    %169 = vmatpush1.msra.mxu0 0.0
    %170 = vmatprep.subr.mxu0 0.0
    %171 = vmatpush1.msra.mxu0 0.0
    %172 = vmatprep.subr.mxu0 0.0
    %173 = vmatpush1.msra.mxu0 0.0
    %174 = vmatprep.subr.mxu0 0.0
    %175 = vmatpush1.msra.mxu0 0.0
    %176 = vmatprep.subr.mxu0 0.0
    %177 = vmatpush1.msra.mxu0 0.0
    %178 = vmatprep.subr.mxu0 0.0
    %179 = vmatpush1.msra.mxu0 0.0
    %180 = vmatprep.subr.mxu0 0.0
    %181 = vmatpush1.msra.mxu0 0.0
    %182 = vmatprep.subr.mxu0 0.0
    %183 = vmatpush1.msra.mxu0 0.0
    %184 = vmatprep.subr.mxu0 0.0
    %185 = vmatpush1.msra.mxu0 0.0
    %186 = vmatprep.subr.mxu0 0.0
    %187 = vmatpush1.msra.mxu0 0.0
    %188 = vmatprep.subr.mxu0 0.0
    %189 = vmatpush1.msra.mxu0 0.0
    %190 = vmatprep.subr.mxu0 0.0
    %191 = vmatpush1.msra.mxu0 0.0
    %192 = vmatprep.subr.mxu0 0.0
    %193 = vmatpush1.msra.mxu0 0.0
    %194 = vmatprep.subr.mxu0 0.0
    %195 = vmatpush1.msra.mxu0 0.0
    %196 = vmatprep.subr.mxu0 0.0
    %197 = vmatpush1.msra.mxu0 0.0
    %198 = vmatprep.subr.mxu0 0.0
    %199 = vmatpush1.msra.mxu0 0.0
    %200 = vmatprep.subr.mxu0 0.0
    %201 = vmatpush1.msra.mxu0 0.0
    %202 = vmatprep.subr.mxu0 0.0
    %203 = vmatpush1.msra.mxu0 0.0
    %204 = vmatprep.subr.mxu0 0.0
    %205 = vmatpush1.msra.mxu0 0.0
    %206 = vmatprep.subr.mxu0 0.0
    %207 = vmatpush1.msra.mxu0 0.0
    %208 = vmatprep.subr.mxu0 0.0
    %209 = vmatpush1.msra.mxu0 0.0
    %210 = vmatprep.subr.mxu0 0.0
    %211 = vmatpush1.msra.mxu0 0.0
    %212 = vmatprep.subr.mxu0 0.0
    %213 = vmatpush1.msra.mxu0 0.0
    %214 = vmatprep.subr.mxu0 0.0
    %215 = vmatpush1.msra.mxu0 0.0
    %216 = vmatprep.subr.mxu0 0.0
    %217 = vmatpush1.msra.mxu0 0.0
    %218 = vmatprep.subr.mxu0 0.0
    %219 = vmatpush1.msra.mxu0 0.0
    %220 = vmatprep.mubr.f32.mxu0 0.0
    %221 = vmatmul.mubr.f32.gmra.mrb[0].mxu0 %v154
    %v222 = vpop.f32.mrb[0].mxu0
    %v223 = vadd.f32 0.0, %v222
    %v224 = vpop.f32.mrb[0].mxu0
    %225 = vdwg.mxu0
    %v226 = vld [vmem:[#allocation2] sm:$0x1]
    %228 = vrot.lane.b32.xlu0 %v223, 32
    %v229 = vpop.permute.xlu0 %228
    %v231 = vadd.f32 %v226, %v229
    %vm232 = vcmask 516352
    %233 = vst.msk [vmem:[#allocation2] sm:$0x1] %vm232, %v231
    %v234 = vld [vmem:[%s2 + $0x1] sm:$0x1]
    %s235 = scalar_lea.vmem [#allocation3], 8
    %v236 = vld [vmem:[%s235] sm:$0xff]
    %v238 = vsel %vm73, %v234, 0
    %240 = vmatprep.subr.mxu0 0.0
    %241 = vmatpush1.msra.mxu0 %v236
    %242 = vmatprep.subr.mxu0 0.0
    %243 = vmatpush1.msra.mxu0 0.0
    %244 = vmatprep.subr.mxu0 0.0
    %245 = vmatpush1.msra.mxu0 0.0
    %246 = vmatprep.subr.mxu0 0.0
    %247 = vmatpush1.msra.mxu0 0.0
    %248 = vmatprep.subr.mxu0 0.0
    %249 = vmatpush1.msra.mxu0 0.0
    %250 = vmatprep.subr.mxu0 0.0
    %251 = vmatpush1.msra.mxu0 0.0
    %252 = vmatprep.subr.mxu0 0.0
    %253 = vmatpush1.msra.mxu0 0.0
    %254 = vmatprep.subr.mxu0 0.0
    %255 = vmatpush1.msra.mxu0 0.0
    %256 = vmatprep.subr.mxu0 0.0
    %257 = vmatpush1.msra.mxu0 0.0
    %258 = vmatprep.subr.mxu0 0.0
    %259 = vmatpush1.msra.mxu0 0.0
    %260 = vmatprep.subr.mxu0 0.0
    %261 = vmatpush1.msra.mxu0 0.0
    %262 = vmatprep.subr.mxu0 0.0
    %263 = vmatpush1.msra.mxu0 0.0
    %264 = vmatprep.subr.mxu0 0.0
    %265 = vmatpush1.msra.mxu0 0.0
    %266 = vmatprep.subr.mxu0 0.0
    %267 = vmatpush1.msra.mxu0 0.0
    %268 = vmatprep.subr.mxu0 0.0
    %269 = vmatpush1.msra.mxu0 0.0
    %270 = vmatprep.subr.mxu0 0.0
    %271 = vmatpush1.msra.mxu0 0.0
    %272 = vmatprep.subr.mxu0 0.0
    %273 = vmatpush1.msra.mxu0 0.0
    %274 = vmatprep.subr.mxu0 0.0
    %275 = vmatpush1.msra.mxu0 0.0
    %276 = vmatprep.subr.mxu0 0.0
    %277 = vmatpush1.msra.mxu0 0.0
    %278 = vmatprep.subr.mxu0 0.0
    %279 = vmatpush1.msra.mxu0 0.0
    %280 = vmatprep.subr.mxu0 0.0
    %281 = vmatpush1.msra.mxu0 0.0
    %282 = vmatprep.subr.mxu0 0.0
    %283 = vmatpush1.msra.mxu0 0.0
    %284 = vmatprep.subr.mxu0 0.0
    %285 = vmatpush1.msra.mxu0 0.0
    %286 = vmatprep.subr.mxu0 0.0
    %287 = vmatpush1.msra.mxu0 0.0
    %288 = vmatprep.subr.mxu0 0.0
    %289 = vmatpush1.msra.mxu0 0.0
    %290 = vmatprep.subr.mxu0 0.0
    %291 = vmatpush1.msra.mxu0 0.0
    %292 = vmatprep.subr.mxu0 0.0
    %293 = vmatpush1.msra.mxu0 0.0
    %294 = vmatprep.subr.mxu0 0.0
    %295 = vmatpush1.msra.mxu0 0.0
    %296 = vmatprep.subr.mxu0 0.0
    %297 = vmatpush1.msra.mxu0 0.0
    %298 = vmatprep.subr.mxu0 0.0
    %299 = vmatpush1.msra.mxu0 0.0
    %300 = vmatprep.subr.mxu0 0.0
    %301 = vmatpush1.msra.mxu0 0.0
    %302 = vmatprep.subr.mxu0 0.0
    %303 = vmatpush1.msra.mxu0 0.0
    %304 = vmatprep.mubr.f32.mxu0 0.0
    %305 = vmatmul.mubr.f32.gmra.mrb[0].mxu0 %v238
    %v306 = vpop.f32.mrb[0].mxu0
    %v307 = vadd.f32 0.0, %v306
    %v308 = vpop.f32.mrb[0].mxu0
    %309 = vdwg.mxu0
    %v310 = vld [vmem:[#allocation2 + $0x1] sm:$0x1]
    %v311 = vadd.f32 %v310, %v307
    %312 = vst.msk [vmem:[#allocation2 + $0x1] sm:$0x1] %vm149, %v311
    %v313 = vld [vmem:[%s3 + $0x1] sm:$0x1]
    %s314 = scalar_lea.vmem [#allocation6], 8
    %v315 = vld [vmem:[%s314] sm:$0xff]
    %v317 = vsel %vm73, %v313, 0
    %319 = vmatprep.subr.mxu0 0.0
    %320 = vmatpush1.msra.mxu0 %v315
    %321 = vmatprep.subr.mxu0 0.0
    %322 = vmatpush1.msra.mxu0 0.0
    %323 = vmatprep.subr.mxu0 0.0
    %324 = vmatpush1.msra.mxu0 0.0
    %325 = vmatprep.subr.mxu0 0.0
    %326 = vmatpush1.msra.mxu0 0.0
    %327 = vmatprep.subr.mxu0 0.0
    %328 = vmatpush1.msra.mxu0 0.0
    %329 = vmatprep.subr.mxu0 0.0
    %330 = vmatpush1.msra.mxu0 0.0
    %331 = vmatprep.subr.mxu0 0.0
    %332 = vmatpush1.msra.mxu0 0.0
    %333 = vmatprep.subr.mxu0 0.0
    %334 = vmatpush1.msra.mxu0 0.0
    %335 = vmatprep.subr.mxu0 0.0
    %336 = vmatpush1.msra.mxu0 0.0
    %337 = vmatprep.subr.mxu0 0.0
    %338 = vmatpush1.msra.mxu0 0.0
    %339 = vmatprep.subr.mxu0 0.0
    %340 = vmatpush1.msra.mxu0 0.0
    %341 = vmatprep.subr.mxu0 0.0
    %342 = vmatpush1.msra.mxu0 0.0
    %343 = vmatprep.subr.mxu0 0.0
    %344 = vmatpush1.msra.mxu0 0.0
    %345 = vmatprep.subr.mxu0 0.0
    %346 = vmatpush1.msra.mxu0 0.0
    %347 = vmatprep.subr.mxu0 0.0
    %348 = vmatpush1.msra.mxu0 0.0
    %349 = vmatprep.subr.mxu0 0.0
    %350 = vmatpush1.msra.mxu0 0.0
    %351 = vmatprep.subr.mxu0 0.0
    %352 = vmatpush1.msra.mxu0 0.0
    %353 = vmatprep.subr.mxu0 0.0
    %354 = vmatpush1.msra.mxu0 0.0
    %355 = vmatprep.subr.mxu0 0.0
    %356 = vmatpush1.msra.mxu0 0.0
    %357 = vmatprep.subr.mxu0 0.0
    %358 = vmatpush1.msra.mxu0 0.0
    %359 = vmatprep.subr.mxu0 0.0
    %360 = vmatpush1.msra.mxu0 0.0
    %361 = vmatprep.subr.mxu0 0.0
    %362 = vmatpush1.msra.mxu0 0.0
    %363 = vmatprep.subr.mxu0 0.0
    %364 = vmatpush1.msra.mxu0 0.0
    %365 = vmatprep.subr.mxu0 0.0
    %366 = vmatpush1.msra.mxu0 0.0
    %367 = vmatprep.subr.mxu0 0.0
    %368 = vmatpush1.msra.mxu0 0.0
    %369 = vmatprep.subr.mxu0 0.0
    %370 = vmatpush1.msra.mxu0 0.0
    %371 = vmatprep.subr.mxu0 0.0
    %372 = vmatpush1.msra.mxu0 0.0
    %373 = vmatprep.subr.mxu0 0.0
    %374 = vmatpush1.msra.mxu0 0.0
    %375 = vmatprep.subr.mxu0 0.0
    %376 = vmatpush1.msra.mxu0 0.0
    %377 = vmatprep.subr.mxu0 0.0
    %378 = vmatpush1.msra.mxu0 0.0
    %379 = vmatprep.subr.mxu0 0.0
    %380 = vmatpush1.msra.mxu0 0.0
    %381 = vmatprep.subr.mxu0 0.0
    %382 = vmatpush1.msra.mxu0 0.0
    %383 = vmatprep.mubr.f32.mxu0 0.0
    %384 = vmatmul.mubr.f32.gmra.mrb[0].mxu0 %v317
    %v385 = vpop.f32.mrb[0].mxu0
    %v386 = vadd.f32 0.0, %v385
    %v387 = vpop.f32.mrb[0].mxu0
    %388 = vdwg.mxu0
    %v389 = vld [vmem:[#allocation2 + $0x1] sm:$0x1]
    %391 = vrot.lane.b32.xlu0 %v386, 32
    %v392 = vpop.permute.xlu0 %391
    %v394 = vadd.f32 %v389, %v392
    %395 = vst.msk [vmem:[#allocation2 + $0x1] sm:$0x1] %vm232, %v394
    // Predicated region
    $region42: #{tpu_custom_call.1} parent=1 // pred_check
      %p396 = pneg %p65
    $region43: #{tpu_custom_call.1} parent=1 // pred_check_branch
      %398 = sbr.rel (%p396) target = $region45
    $region44: #{tpu_custom_call.1} parent=1 // pred_region
      %v399 = vld [vmem:[#allocation2] sm:$0x3]
      %v400 = vld [vmem:[#allocation8] sm:$0xff]
      %v401 = vld [vmem:[#allocation8 + $0x8] sm:$0xff]
      %v402 = vld [vmem:[#allocation8 + $0x10] sm:$0xff]
      %v403 = vld [vmem:[#allocation8 + $0x18] sm:$0xff]
      %v404 = vld [vmem:[#allocation8 + $0x20] sm:$0xff]
      %v405 = vld [vmem:[#allocation8 + $0x28] sm:$0xff]
      %v406 = vld [vmem:[#allocation8 + $0x30] sm:$0xff]
      %v407 = vld [vmem:[#allocation8 + $0x38] sm:$0xff]
      %v408 = vld [vmem:[%s5] sm:$0x1]
      %v410 = vlaneseq
      %v411 = vshrl.u32 %v410, 7
      %v412 = vsub.s32 0, %v411
      %v413 = vrot.slane %v408, %v412
      %vm415 = vcmask 523264
      %v417 = vsel %vm415, %v399, 0
      %419 = vmatprep.subr.mxu0 0.0
      %420 = vmatpush1.msra.mxu0 %v400
      %421 = vmatprep.subr.mxu0 0.0
      %422 = vmatpush1.msra.mxu0 %v401
      %423 = vmatprep.subr.mxu0 0.0
      %424 = vmatpush1.msra.mxu0 %v402
      %425 = vmatprep.subr.mxu0 0.0
      %426 = vmatpush1.msra.mxu0 %v403
      %427 = vmatprep.subr.mxu0 0.0
      %428 = vmatpush1.msra.mxu0 %v404
      %429 = vmatprep.subr.mxu0 0.0
      %430 = vmatpush1.msra.mxu0 %v405
      %431 = vmatprep.subr.mxu0 0.0
      %432 = vmatpush1.msra.mxu0 %v406
      %433 = vmatprep.subr.mxu0 0.0
      %434 = vmatpush1.msra.mxu0 %v407
      %435 = vmatprep.subr.mxu0 0.0
      %436 = vmatpush1.msra.mxu0 0.0
      %437 = vmatprep.subr.mxu0 0.0
      %438 = vmatpush1.msra.mxu0 0.0
      %439 = vmatprep.subr.mxu0 0.0
      %440 = vmatpush1.msra.mxu0 0.0
      %441 = vmatprep.subr.mxu0 0.0
      %442 = vmatpush1.msra.mxu0 0.0
      %443 = vmatprep.subr.mxu0 0.0
      %444 = vmatpush1.msra.mxu0 0.0
      %445 = vmatprep.subr.mxu0 0.0
      %446 = vmatpush1.msra.mxu0 0.0
      %447 = vmatprep.subr.mxu0 0.0
      %448 = vmatpush1.msra.mxu0 0.0
      %449 = vmatprep.subr.mxu0 0.0
      %450 = vmatpush1.msra.mxu0 0.0
      %451 = vmatprep.subr.mxu0 0.0
      %452 = vmatpush1.msra.mxu0 0.0
      %453 = vmatprep.subr.mxu0 0.0
      %454 = vmatpush1.msra.mxu0 0.0
      %455 = vmatprep.subr.mxu0 0.0
      %456 = vmatpush1.msra.mxu0 0.0
      %457 = vmatprep.subr.mxu0 0.0
      %458 = vmatpush1.msra.mxu0 0.0
      %459 = vmatprep.subr.mxu0 0.0
      %460 = vmatpush1.msra.mxu0 0.0
      %461 = vmatprep.subr.mxu0 0.0
      %462 = vmatpush1.msra.mxu0 0.0
      %463 = vmatprep.subr.mxu0 0.0
      %464 = vmatpush1.msra.mxu0 0.0
      %465 = vmatprep.subr.mxu0 0.0
      %466 = vmatpush1.msra.mxu0 0.0
      %467 = vmatprep.subr.mxu0 0.0
      %468 = vmatpush1.msra.mxu0 0.0
      %469 = vmatprep.subr.mxu0 0.0
      %470 = vmatpush1.msra.mxu0 0.0
      %471 = vmatprep.subr.mxu0 0.0
      %472 = vmatpush1.msra.mxu0 0.0
      %473 = vmatprep.subr.mxu0 0.0
      %474 = vmatpush1.msra.mxu0 0.0
      %475 = vmatprep.subr.mxu0 0.0
      %476 = vmatpush1.msra.mxu0 0.0
      %477 = vmatprep.subr.mxu0 0.0
      %478 = vmatpush1.msra.mxu0 0.0
      %479 = vmatprep.subr.mxu0 0.0
      %480 = vmatpush1.msra.mxu0 0.0
      %481 = vmatprep.subr.mxu0 0.0
      %482 = vmatpush1.msra.mxu0 0.0
      %483 = vmatprep.mubr.f32.mxu0 0.0
      %484 = vmatmul.mubr.f32.gmra.mrb[0].mxu0 %v417
      %v485 = vpop.f32.mrb[0].mxu0
      %v486 = vadd.f32 %v413, %v485
      %v487 = vpop.f32.mrb[0].mxu0
      %488 = vdwg.mxu0
      %489 = vst [vmem:[#allocation9] sm:$0x3] %v486
    $region45: #{tpu_custom_call.1} parent=1 // pred_fallthru
      _
    // Predicated region
    $region46: #{tpu_custom_call.1} parent=1 // pred_check
      _
    $region47: #{tpu_custom_call.1} parent=1 // pred_check_branch
      %491 = sbr.rel (0) target = $region49
    $region48: #{tpu_custom_call.1} parent=1 // pred_region
      %s493 = ssub.s32 32, 32
      %494 = vsyncadd [#allocation5], %s493
      %s496 = sshll.u32 [#allocation9], 4
      %s497 = int_to_ptr.vmem [resolvable:$true] %s496
      %499 = dma.vmem_to_hbm [thread:$0]  %s497, 32, %s6, [#allocation5]
    $region49: #{tpu_custom_call.1} parent=1 // pred_fallthru
      _
    // Predicated region
    $region50: #{tpu_custom_call.1} parent=1 // pred_check
      _
    $region51: #{tpu_custom_call.1} parent=1 // pred_check_branch
      %501 = sbr.rel (0) target = $region53
    $region52: #{tpu_custom_call.1} parent=1 // pred_region
      %502 = dma.done [#allocation5], 32
    $region53: #{tpu_custom_call.1} parent=1 // pred_fallthru
      _
    %503 = vsyncpa [#allocation4], 1
    %504 = vsyncpa [#allocation7], 1
    %505 = vsyncpa [#allocation5], 1

// kernel: tpu_custom_call.1
$region0: #{tpu_custom_call.1}
  #allocation0 [shape = 'u32[]', space=smem, size = 0x4, offset = 0x4, fixed_abs, tag = 'smem constant byte address 0x4 - core index']
  #allocation1 [shape = 'u32[144,128]{1,0:T(1,128)}', space=vmem, size = 0x12000, scoped, tag = 'internal scratch']
  #allocation2 [shape = 'f32[2,64]{1,0:T(2,128)}', space=vmem, size = 0x400, scoped, tag = 'scratch operand']
  %s0 = inlined_call_operand.hbm [shape: f32[2,8,32], index: 0, kind: input, shape index: {}]
  %s1 = inlined_call_operand.hbm [shape: f32[2,8,32], index: 1, kind: input, shape index: {}]
  %s2 = inlined_call_operand.vmem [shape: f32[2,8], index: 2, kind: input, shape index: {}]
  %s3 = inlined_call_operand.vmem [shape: f32[2,8], index: 3, kind: input, shape index: {}]
  %s4 = inlined_call_operand.hbm [shape: f32[64,128], index: 4, kind: input, shape index: {}]
  %s5 = inlined_call_operand.vmem [shape: f32[1,128], index: 5, kind: input, shape index: {}]
  %s6 = inlined_call_operand.hbm [shape: f32[2,128], index: 6, kind: output, shape index: {}]
  %s7 = sld [smem:[#allocation0]]
  $region54: #{tpu_custom_call.1} parent=0
    _
  %s9 = ssub.s32 1, %s7
  %s10 = scalar_select 0, %s9, %s7
  $region1: #{tpu_custom_call.1} parent=0
    #allocation3 [shape = 'u8[8192]{0}', space=vmem, size = 0x2000, scoped, tag = 'input window, operand 0, single buffered']
    #allocation4 [shape = 's32[1]{0}', space=sflag, size = 0x4, scoped, tag = 'scoped memory for tpu_custom_call.1']
    #allocation5 [shape = 's32[1]{0}', space=sflag, size = 0x4, scoped, tag = 'scoped memory for tpu_custom_call.1']
    #allocation6 [shape = 'u8[8192]{0}', space=vmem, size = 0x2000, scoped, tag = 'input window, operand 1, single buffered']
    #allocation7 [shape = 's32[1]{0}', space=sflag, size = 0x4, scoped, tag = 'scoped memory for tpu_custom_call.1']
    #allocation8 [shape = 'u8[32768]{0}', space=vmem, size = 0x8000, scoped, tag = 'input window, operand 4, single buffered']
    #allocation9 [shape = 'u8[1024]{0}', space=vmem, size = 0x400, scoped, tag = 'output window, operand 0, single buffered']
    %11 = vsyncpa [#allocation4], 0
    %12 = vsyncpa [#allocation7], 0
    %13 = vsyncpa [#allocation5], 0
    // Predicated region
    $region2: #{tpu_custom_call.1} parent=1 // pred_check
      _
    $region3: #{tpu_custom_call.1} parent=1 // pred_check_branch
      %15 = sbr.rel (0) target = $region5
    $region4: #{tpu_custom_call.1} parent=1 // pred_region
      %s17 = ssub.s32 256, 256
      %18 = vsyncadd [#allocation4], %s17
      %s19 = sshll.u32 [#allocation3], 4
      %s20 = int_to_ptr.vmem [resolvable:$true] %s19
      %25 = dma.hbm_to_vmem [thread:$0]  %s0, 256, %s20, [#allocation4], 128, 128, 8
    $region5: #{tpu_custom_call.1} parent=1 // pred_fallthru
      _
    // Predicated region
    $region6: #{tpu_custom_call.1} parent=1 // pred_check
      _
    $region7: #{tpu_custom_call.1} parent=1 // pred_check_branch
      %27 = sbr.rel (0) target = $region9
    $region8: #{tpu_custom_call.1} parent=1 // pred_region
      %s29 = ssub.s32 256, 256
      %30 = vsyncadd [#allocation7], %s29
      %s31 = sshll.u32 [#allocation6], 4
      %s32 = int_to_ptr.vmem [resolvable:$true] %s31
      %37 = dma.hbm_to_vmem [thread:$0]  %s1, 256, %s32, [#allocation7], 128, 128, 8
    $region9: #{tpu_custom_call.1} parent=1 // pred_fallthru
      _
    // Predicated region
    $region10: #{tpu_custom_call.1} parent=1 // pred_check
      _
    $region11: #{tpu_custom_call.1} parent=1 // pred_check_branch
      %39 = sbr.rel (0) target = $region13
    $region12: #{tpu_custom_call.1} parent=1 // pred_region
      _
    $region13: #{tpu_custom_call.1} parent=1 // pred_fallthru
      _
    // Predicated region
    $region14: #{tpu_custom_call.1} parent=1 // pred_check
      _
    $region15: #{tpu_custom_call.1} parent=1 // pred_check_branch
      %41 = sbr.rel (0) target = $region17
    $region16: #{tpu_custom_call.1} parent=1 // pred_region
      _
    $region17: #{tpu_custom_call.1} parent=1 // pred_fallthru
      _
    // Predicated region
    $region18: #{tpu_custom_call.1} parent=1 // pred_check
      _
    $region19: #{tpu_custom_call.1} parent=1 // pred_check_branch
      %43 = sbr.rel (0) target = $region21
    $region20: #{tpu_custom_call.1} parent=1 // pred_region
      %s45 = ssub.s32 1024, 1024
      %46 = vsyncadd [#allocation7], %s45
      %s47 = sshll.u32 [#allocation8], 4
      %s48 = int_to_ptr.vmem [resolvable:$true] %s47
      %53 = dma.hbm_to_vmem [thread:$0]  %s4, 1024, %s48, [#allocation7], 128, 128, 8
    $region21: #{tpu_custom_call.1} parent=1 // pred_fallthru
      _
    // Predicated region
    $region22: #{tpu_custom_call.1} parent=1 // pred_check
      _
    $region23: #{tpu_custom_call.1} parent=1 // pred_check_branch
      %55 = sbr.rel (0) target = $region25
    $region24: #{tpu_custom_call.1} parent=1 // pred_region
      _
    $region25: #{tpu_custom_call.1} parent=1 // pred_fallthru
      _
    // Predicated region
    $region26: #{tpu_custom_call.1} parent=1 // pred_check
      _
    $region27: #{tpu_custom_call.1} parent=1 // pred_check_branch
      %57 = sbr.rel (0) target = $region29
    $region28: #{tpu_custom_call.1} parent=1 // pred_region
      %58 = dma.done [#allocation4], 256
    $region29: #{tpu_custom_call.1} parent=1 // pred_fallthru
      _
    // Predicated region
    $region30: #{tpu_custom_call.1} parent=1 // pred_check
      _
    $region31: #{tpu_custom_call.1} parent=1 // pred_check_branch
      %60 = sbr.rel (0) target = $region33
    $region32: #{tpu_custom_call.1} parent=1 // pred_region
      %61 = dma.done [#allocation7], 256
    $region33: #{tpu_custom_call.1} parent=1 // pred_fallthru
      _
    // Predicated region
    $region34: #{tpu_custom_call.1} parent=1 // pred_check
      _
    $region35: #{tpu_custom_call.1} parent=1 // pred_check_branch
      %63 = sbr.rel (0) target = $region37
    $region36: #{tpu_custom_call.1} parent=1 // pred_region
      %64 = dma.done [#allocation7], 1024
    $region37: #{tpu_custom_call.1} parent=1 // pred_fallthru
      _
    %p65 = scmp.eq.s32.totalorder 0, 0
    // Predicated region
    $region38: #{tpu_custom_call.1} parent=1 // pred_check
      %p66 = pneg %p65
    $region39: #{tpu_custom_call.1} parent=1 // pred_check_branch
      %68 = sbr.rel (%p66) target = $region41
    $region40: #{tpu_custom_call.1} parent=1 // pred_region
      %vm69 = vcmask 517120
      %70 = vst.msk [vmem:[#allocation2] sm:$0x3] %vm69, 0.0
    $region41: #{tpu_custom_call.1} parent=1 // pred_fallthru
      _
    %v71 = vld [vmem:[%s2] sm:$0x1]
    %v72 = vld [vmem:[#allocation3] sm:$0xff]
    %vm73 = vcmask 64512
    %v75 = vsel %vm73, %v71, 0
    %77 = vmatprep.subr.mxu0 0.0
    %78 = vmatpush1.msra.mxu0 %v72
    %79 = vmatprep.subr.mxu0 0.0
    %80 = vmatpush1.msra.mxu0 0.0
    %81 = vmatprep.subr.mxu0 0.0
    %82 = vmatpush1.msra.mxu0 0.0
    %83 = vmatprep.subr.mxu0 0.0
    %84 = vmatpush1.msra.mxu0 0.0
    %85 = vmatprep.subr.mxu0 0.0
    %86 = vmatpush1.msra.mxu0 0.0
    %87 = vmatprep.subr.mxu0 0.0
    %88 = vmatpush1.msra.mxu0 0.0
    %89 = vmatprep.subr.mxu0 0.0
    %90 = vmatpush1.msra.mxu0 0.0
    %91 = vmatprep.subr.mxu0 0.0
    %92 = vmatpush1.msra.mxu0 0.0
    %93 = vmatprep.subr.mxu0 0.0
    %94 = vmatpush1.msra.mxu0 0.0
    %95 = vmatprep.subr.mxu0 0.0
    %96 = vmatpush1.msra.mxu0 0.0
    %97 = vmatprep.subr.mxu0 0.0
    %98 = vmatpush1.msra.mxu0 0.0
    %99 = vmatprep.subr.mxu0 0.0
    %100 = vmatpush1.msra.mxu0 0.0
    %101 = vmatprep.subr.mxu0 0.0
    %102 = vmatpush1.msra.mxu0 0.0
    %103 = vmatprep.subr.mxu0 0.0
    %104 = vmatpush1.msra.mxu0 0.0
    %105 = vmatprep.subr.mxu0 0.0
    %106 = vmatpush1.msra.mxu0 0.0
    %107 = vmatprep.subr.mxu0 0.0
    %108 = vmatpush1.msra.mxu0 0.0
    %109 = vmatprep.subr.mxu0 0.0
    %110 = vmatpush1.msra.mxu0 0.0
    %111 = vmatprep.subr.mxu0 0.0
    %112 = vmatpush1.msra.mxu0 0.0
    %113 = vmatprep.subr.mxu0 0.0
    %114 = vmatpush1.msra.mxu0 0.0
    %115 = vmatprep.subr.mxu0 0.0
    %116 = vmatpush1.msra.mxu0 0.0
    %117 = vmatprep.subr.mxu0 0.0
    %118 = vmatpush1.msra.mxu0 0.0
    %119 = vmatprep.subr.mxu0 0.0
    %120 = vmatpush1.msra.mxu0 0.0
    %121 = vmatprep.subr.mxu0 0.0
    %122 = vmatpush1.msra.mxu0 0.0
    %123 = vmatprep.subr.mxu0 0.0
    %124 = vmatpush1.msra.mxu0 0.0
    %125 = vmatprep.subr.mxu0 0.0
    %126 = vmatpush1.msra.mxu0 0.0
    %127 = vmatprep.subr.mxu0 0.0
    %128 = vmatpush1.msra.mxu0 0.0
    %129 = vmatprep.subr.mxu0 0.0
    %130 = vmatpush1.msra.mxu0 0.0
    %131 = vmatprep.subr.mxu0 0.0
    %132 = vmatpush1.msra.mxu0 0.0
    %133 = vmatprep.subr.mxu0 0.0
    %134 = vmatpush1.msra.mxu0 0.0
    %135 = vmatprep.subr.mxu0 0.0
    %136 = vmatpush1.msra.mxu0 0.0
    %137 = vmatprep.subr.mxu0 0.0
    %138 = vmatpush1.msra.mxu0 0.0
    %139 = vmatprep.subr.mxu0 0.0
    %140 = vmatpush1.msra.mxu0 0.0
    %141 = vmatprep.mubr.f32.mxu0 0.0
    %142 = vmatmul.mubr.f32.gmra.mrb[0].mxu0 %v75
    %v143 = vpop.f32.mrb[0].mxu0
    %v144 = vadd.f32 0.0, %v143
    %v145 = vpop.f32.mrb[0].mxu0
    %146 = vdwg.mxu0
    %v147 = vld [vmem:[#allocation2] sm:$0x1]
    %v148 = vadd.f32 %v147, %v144
    %vm149 = vcmask 253952
    %150 = vst.msk [vmem:[#allocation2] sm:$0x1] %vm149, %v148
    %v151 = vld [vmem:[%s3] sm:$0x1]
    %v152 = vld [vmem:[#allocation6] sm:$0xff]
    %v154 = vsel %vm73, %v151, 0
    %156 = vmatprep.subr.mxu0 0.0
    %157 = vmatpush1.msra.mxu0 %v152
    %158 = vmatprep.subr.mxu0 0.0
    %159 = vmatpush1.msra.mxu0 0.0
    %160 = vmatprep.subr.mxu0 0.0
    %161 = vmatpush1.msra.mxu0 0.0
    %162 = vmatprep.subr.mxu0 0.0
    %163 = vmatpush1.msra.mxu0 0.0
    %164 = vmatprep.subr.mxu0 0.0
    %165 = vmatpush1.msra.mxu0 0.0
    %166 = vmatprep.subr.mxu0 0.0
    %167 = vmatpush1.msra.mxu0 0.0
    %168 = vmatprep.subr.mxu0 0.0
    %169 = vmatpush1.msra.mxu0 0.0
    %170 = vmatprep.subr.mxu0 0.0
    %171 = vmatpush1.msra.mxu0 0.0
    %172 = vmatprep.subr.mxu0 0.0
    %173 = vmatpush1.msra.mxu0 0.0
    %174 = vmatprep.subr.mxu0 0.0
    %175 = vmatpush1.msra.mxu0 0.0
    %176 = vmatprep.subr.mxu0 0.0
    %177 = vmatpush1.msra.mxu0 0.0
    %178 = vmatprep.subr.mxu0 0.0
    %179 = vmatpush1.msra.mxu0 0.0
    %180 = vmatprep.subr.mxu0 0.0
    %181 = vmatpush1.msra.mxu0 0.0
    %182 = vmatprep.subr.mxu0 0.0
    %183 = vmatpush1.msra.mxu0 0.0
    %184 = vmatprep.subr.mxu0 0.0
    %185 = vmatpush1.msra.mxu0 0.0
    %186 = vmatprep.subr.mxu0 0.0
    %187 = vmatpush1.msra.mxu0 0.0
    %188 = vmatprep.subr.mxu0 0.0
    %189 = vmatpush1.msra.mxu0 0.0
    %190 = vmatprep.subr.mxu0 0.0
    %191 = vmatpush1.msra.mxu0 0.0
    %192 = vmatprep.subr.mxu0 0.0
    %193 = vmatpush1.msra.mxu0 0.0
    %194 = vmatprep.subr.mxu0 0.0
    %195 = vmatpush1.msra.mxu0 0.0
    %196 = vmatprep.subr.mxu0 0.0
    %197 = vmatpush1.msra.mxu0 0.0
    %198 = vmatprep.subr.mxu0 0.0
    %199 = vmatpush1.msra.mxu0 0.0
    %200 = vmatprep.subr.mxu0 0.0
    %201 = vmatpush1.msra.mxu0 0.0
    %202 = vmatprep.subr.mxu0 0.0
    %203 = vmatpush1.msra.mxu0 0.0
    %204 = vmatprep.subr.mxu0 0.0
    %205 = vmatpush1.msra.mxu0 0.0
    %206 = vmatprep.subr.mxu0 0.0
    %207 = vmatpush1.msra.mxu0 0.0
    %208 = vmatprep.subr.mxu0 0.0
    %209 = vmatpush1.msra.mxu0 0.0
    %210 = vmatprep.subr.mxu0 0.0
    %211 = vmatpush1.msra.mxu0 0.0
    %212 = vmatprep.subr.mxu0 0.0
    %213 = vmatpush1.msra.mxu0 0.0
    %214 = vmatprep.subr.mxu0 0.0
    %215 = vmatpush1.msra.mxu0 0.0
    %216 = vmatprep.subr.mxu0 0.0
    %217 = vmatpush1.msra.mxu0 0.0
    %218 = vmatprep.subr.mxu0 0.0
    %219 = vmatpush1.msra.mxu0 0.0
    %220 = vmatprep.mubr.f32.mxu0 0.0
    %221 = vmatmul.mubr.f32.gmra.mrb[0].mxu0 %v154
    %v222 = vpop.f32.mrb[0].mxu0
    %v223 = vadd.f32 0.0, %v222
    %v224 = vpop.f32.mrb[0].mxu0
    %225 = vdwg.mxu0
    %v226 = vld [vmem:[#allocation2] sm:$0x1]
    %228 = vrot.lane.b32.xlu0 %v223, 32
    %v229 = vpop.permute.xlu0 %228
    %v231 = vadd.f32 %v226, %v229
    %vm232 = vcmask 516352
    %233 = vst.msk [vmem:[#allocation2] sm:$0x1] %vm232, %v231
    %v234 = vld [vmem:[%s2 + $0x1] sm:$0x1]
    %s235 = scalar_lea.vmem [#allocation3], 8
    %v236 = vld [vmem:[%s235] sm:$0xff]
    %v238 = vsel %vm73, %v234, 0
    %240 = vmatprep.subr.mxu0 0.0
    %241 = vmatpush1.msra.mxu0 %v236
    %242 = vmatprep.subr.mxu0 0.0
    %243 = vmatpush1.msra.mxu0 0.0
    %244 = vmatprep.subr.mxu0 0.0
    %245 = vmatpush1.msra.mxu0 0.0
    %246 = vmatprep.subr.mxu0 0.0
    %247 = vmatpush1.msra.mxu0 0.0
    %248 = vmatprep.subr.mxu0 0.0
    %249 = vmatpush1.msra.mxu0 0.0
    %250 = vmatprep.subr.mxu0 0.0
    %251 = vmatpush1.msra.mxu0 0.0
    %252 = vmatprep.subr.mxu0 0.0
    %253 = vmatpush1.msra.mxu0 0.0
    %254 = vmatprep.subr.mxu0 0.0
    %255 = vmatpush1.msra.mxu0 0.0
    %256 = vmatprep.subr.mxu0 0.0
    %257 = vmatpush1.msra.mxu0 0.0
    %258 = vmatprep.subr.mxu0 0.0
    %259 = vmatpush1.msra.mxu0 0.0
    %260 = vmatprep.subr.mxu0 0.0
    %261 = vmatpush1.msra.mxu0 0.0
    %262 = vmatprep.subr.mxu0 0.0
    %263 = vmatpush1.msra.mxu0 0.0
    %264 = vmatprep.subr.mxu0 0.0
    %265 = vmatpush1.msra.mxu0 0.0
    %266 = vmatprep.subr.mxu0 0.0
    %267 = vmatpush1.msra.mxu0 0.0
    %268 = vmatprep.subr.mxu0 0.0
    %269 = vmatpush1.msra.mxu0 0.0
    %270 = vmatprep.subr.mxu0 0.0
    %271 = vmatpush1.msra.mxu0 0.0
    %272 = vmatprep.subr.mxu0 0.0
    %273 = vmatpush1.msra.mxu0 0.0
    %274 = vmatprep.subr.mxu0 0.0
    %275 = vmatpush1.msra.mxu0 0.0
    %276 = vmatprep.subr.mxu0 0.0
    %277 = vmatpush1.msra.mxu0 0.0
    %278 = vmatprep.subr.mxu0 0.0
    %279 = vmatpush1.msra.mxu0 0.0
    %280 = vmatprep.subr.mxu0 0.0
    %281 = vmatpush1.msra.mxu0 0.0
    %282 = vmatprep.subr.mxu0 0.0
    %283 = vmatpush1.msra.mxu0 0.0
    %284 = vmatprep.subr.mxu0 0.0
    %285 = vmatpush1.msra.mxu0 0.0
    %286 = vmatprep.subr.mxu0 0.0
    %287 = vmatpush1.msra.mxu0 0.0
    %288 = vmatprep.subr.mxu0 0.0
    %289 = vmatpush1.msra.mxu0 0.0
    %290 = vmatprep.subr.mxu0 0.0
    %291 = vmatpush1.msra.mxu0 0.0
    %292 = vmatprep.subr.mxu0 0.0
    %293 = vmatpush1.msra.mxu0 0.0
    %294 = vmatprep.subr.mxu0 0.0
    %295 = vmatpush1.msra.mxu0 0.0
    %296 = vmatprep.subr.mxu0 0.0
    %297 = vmatpush1.msra.mxu0 0.0
    %298 = vmatprep.subr.mxu0 0.0
    %299 = vmatpush1.msra.mxu0 0.0
    %300 = vmatprep.subr.mxu0 0.0
    %301 = vmatpush1.msra.mxu0 0.0
    %302 = vmatprep.subr.mxu0 0.0
    %303 = vmatpush1.msra.mxu0 0.0
    %304 = vmatprep.mubr.f32.mxu0 0.0
    %305 = vmatmul.mubr.f32.gmra.mrb[0].mxu0 %v238
    %v306 = vpop.f32.mrb[0].mxu0
    %v307 = vadd.f32 0.0, %v306
    %v308 = vpop.f32.mrb[0].mxu0
    %309 = vdwg.mxu0
    %v310 = vld [vmem:[#allocation2 + $0x1] sm:$0x1]
    %v311 = vadd.f32 %v310, %v307
    %312 = vst.msk [vmem:[#allocation2 + $0x1] sm:$0x1] %vm149, %v311
    %v313 = vld [vmem:[%s3 + $0x1] sm:$0x1]
    %s314 = scalar_lea.vmem [#allocation6], 8
    %v315 = vld [vmem:[%s314] sm:$0xff]
    %v317 = vsel %vm73, %v313, 0
    %319 = vmatprep.subr.mxu0 0.0
    %320 = vmatpush1.msra.mxu0 %v315
    %321 = vmatprep.subr.mxu0 0.0
    %322 = vmatpush1.msra.mxu0 0.0
    %323 = vmatprep.subr.mxu0 0.0
    %324 = vmatpush1.msra.mxu0 0.0
    %325 = vmatprep.subr.mxu0 0.0
    %326 = vmatpush1.msra.mxu0 0.0
    %327 = vmatprep.subr.mxu0 0.0
    %328 = vmatpush1.msra.mxu0 0.0
    %329 = vmatprep.subr.mxu0 0.0
    %330 = vmatpush1.msra.mxu0 0.0
    %331 = vmatprep.subr.mxu0 0.0
    %332 = vmatpush1.msra.mxu0 0.0
    %333 = vmatprep.subr.mxu0 0.0
    %334 = vmatpush1.msra.mxu0 0.0
    %335 = vmatprep.subr.mxu0 0.0
    %336 = vmatpush1.msra.mxu0 0.0
    %337 = vmatprep.subr.mxu0 0.0
    %338 = vmatpush1.msra.mxu0 0.0
    %339 = vmatprep.subr.mxu0 0.0
    %340 = vmatpush1.msra.mxu0 0.0
    %341 = vmatprep.subr.mxu0 0.0
    %342 = vmatpush1.msra.mxu0 0.0
    %343 = vmatprep.subr.mxu0 0.0
    %344 = vmatpush1.msra.mxu0 0.0
    %345 = vmatprep.subr.mxu0 0.0
    %346 = vmatpush1.msra.mxu0 0.0
    %347 = vmatprep.subr.mxu0 0.0
    %348 = vmatpush1.msra.mxu0 0.0
    %349 = vmatprep.subr.mxu0 0.0
    %350 = vmatpush1.msra.mxu0 0.0
    %351 = vmatprep.subr.mxu0 0.0
    %352 = vmatpush1.msra.mxu0 0.0
    %353 = vmatprep.subr.mxu0 0.0
    %354 = vmatpush1.msra.mxu0 0.0
    %355 = vmatprep.subr.mxu0 0.0
    %356 = vmatpush1.msra.mxu0 0.0
    %357 = vmatprep.subr.mxu0 0.0
    %358 = vmatpush1.msra.mxu0 0.0
    %359 = vmatprep.subr.mxu0 0.0
    %360 = vmatpush1.msra.mxu0 0.0
    %361 = vmatprep.subr.mxu0 0.0
    %362 = vmatpush1.msra.mxu0 0.0
    %363 = vmatprep.subr.mxu0 0.0
    %364 = vmatpush1.msra.mxu0 0.0
    %365 = vmatprep.subr.mxu0 0.0
    %366 = vmatpush1.msra.mxu0 0.0
    %367 = vmatprep.subr.mxu0 0.0
    %368 = vmatpush1.msra.mxu0 0.0
    %369 = vmatprep.subr.mxu0 0.0
    %370 = vmatpush1.msra.mxu0 0.0
    %371 = vmatprep.subr.mxu0 0.0
    %372 = vmatpush1.msra.mxu0 0.0
    %373 = vmatprep.subr.mxu0 0.0
    %374 = vmatpush1.msra.mxu0 0.0
    %375 = vmatprep.subr.mxu0 0.0
    %376 = vmatpush1.msra.mxu0 0.0
    %377 = vmatprep.subr.mxu0 0.0
    %378 = vmatpush1.msra.mxu0 0.0
    %379 = vmatprep.subr.mxu0 0.0
    %380 = vmatpush1.msra.mxu0 0.0
    %381 = vmatprep.subr.mxu0 0.0
    %382 = vmatpush1.msra.mxu0 0.0
    %383 = vmatprep.mubr.f32.mxu0 0.0
    %384 = vmatmul.mubr.f32.gmra.mrb[0].mxu0 %v317
    %v385 = vpop.f32.mrb[0].mxu0
    %v386 = vadd.f32 0.0, %v385
    %v387 = vpop.f32.mrb[0].mxu0
    %388 = vdwg.mxu0
    %v389 = vld [vmem:[#allocation2 + $0x1] sm:$0x1]
    %391 = vrot.lane.b32.xlu0 %v386, 32
    %v392 = vpop.permute.xlu0 %391
    %v394 = vadd.f32 %v389, %v392
    %395 = vst.msk [vmem:[#allocation2 + $0x1] sm:$0x1] %vm232, %v394
    // Predicated region
    $region42: #{tpu_custom_call.1} parent=1 // pred_check
      %p396 = pneg %p65
    $region43: #{tpu_custom_call.1} parent=1 // pred_check_branch
      %398 = sbr.rel (%p396) target = $region45
    $region44: #{tpu_custom_call.1} parent=1 // pred_region
      %v399 = vld [vmem:[#allocation2] sm:$0x3]
      %v400 = vld [vmem:[#allocation8] sm:$0xff]
      %v401 = vld [vmem:[#allocation8 + $0x8] sm:$0xff]
      %v402 = vld [vmem:[#allocation8 + $0x10] sm:$0xff]
      %v403 = vld [vmem:[#allocation8 + $0x18] sm:$0xff]
      %v404 = vld [vmem:[#allocation8 + $0x20] sm:$0xff]
      %v405 = vld [vmem:[#allocation8 + $0x28] sm:$0xff]
      %v406 = vld [vmem:[#allocation8 + $0x30] sm:$0xff]
      %v407 = vld [vmem:[#allocation8 + $0x38] sm:$0xff]
      %v408 = vld [vmem:[%s5] sm:$0x1]
      %v410 = vlaneseq
      %v411 = vshrl.u32 %v410, 7
      %v412 = vsub.s32 0, %v411
      %v413 = vrot.slane %v408, %v412
      %vm415 = vcmask 523264
      %v417 = vsel %vm415, %v399, 0
      %419 = vmatprep.subr.mxu0 0.0
      %420 = vmatpush1.msra.mxu0 %v400
      %421 = vmatprep.subr.mxu0 0.0
      %422 = vmatpush1.msra.mxu0 %v401
      %423 = vmatprep.subr.mxu0 0.0
      %424 = vmatpush1.msra.mxu0 %v402
      %425 = vmatprep.subr.mxu0 0.0
      %426 = vmatpush1.msra.mxu0 %v403
      %427 = vmatprep.subr.mxu0 0.0
      %428 = vmatpush1.msra.mxu0 %v404
      %429 = vmatprep.subr.mxu0 0.0
      %430 = vmatpush1.msra.mxu0 %v405
      %431 = vmatprep.subr.mxu0 0.0
      %432 = vmatpush1.msra.mxu0 %v406
      %433 = vmatprep.subr.mxu0 0.0
      %434 = vmatpush1.msra.mxu0 %v407
      %435 = vmatprep.subr.mxu0 0.0
      %436 = vmatpush1.msra.mxu0 0.0
      %437 = vmatprep.subr.mxu0 0.0
      %438 = vmatpush1.msra.mxu0 0.0
      %439 = vmatprep.subr.mxu0 0.0
      %440 = vmatpush1.msra.mxu0 0.0
      %441 = vmatprep.subr.mxu0 0.0
      %442 = vmatpush1.msra.mxu0 0.0
      %443 = vmatprep.subr.mxu0 0.0
      %444 = vmatpush1.msra.mxu0 0.0
      %445 = vmatprep.subr.mxu0 0.0
      %446 = vmatpush1.msra.mxu0 0.0
      %447 = vmatprep.subr.mxu0 0.0
      %448 = vmatpush1.msra.mxu0 0.0
      %449 = vmatprep.subr.mxu0 0.0
      %450 = vmatpush1.msra.mxu0 0.0
      %451 = vmatprep.subr.mxu0 0.0
      %452 = vmatpush1.msra.mxu0 0.0
      %453 = vmatprep.subr.mxu0 0.0
      %454 = vmatpush1.msra.mxu0 0.0
      %455 = vmatprep.subr.mxu0 0.0
      %456 = vmatpush1.msra.mxu0 0.0
      %457 = vmatprep.subr.mxu0 0.0
      %458 = vmatpush1.msra.mxu0 0.0
      %459 = vmatprep.subr.mxu0 0.0
      %460 = vmatpush1.msra.mxu0 0.0
      %461 = vmatprep.subr.mxu0 0.0
      %462 = vmatpush1.msra.mxu0 0.0
      %463 = vmatprep.subr.mxu0 0.0
      %464 = vmatpush1.msra.mxu0 0.0
      %465 = vmatprep.subr.mxu0 0.0
      %466 = vmatpush1.msra.mxu0 0.0
      %467 = vmatprep.subr.mxu0 0.0
      %468 = vmatpush1.msra.mxu0 0.0
      %469 = vmatprep.subr.mxu0 0.0
      %470 = vmatpush1.msra.mxu0 0.0
      %471 = vmatprep.subr.mxu0 0.0
      %472 = vmatpush1.msra.mxu0 0.0
      %473 = vmatprep.subr.mxu0 0.0
      %474 = vmatpush1.msra.mxu0 0.0
      %475 = vmatprep.subr.mxu0 0.0
      %476 = vmatpush1.msra.mxu0 0.0
      %477 = vmatprep.subr.mxu0 0.0
      %478 = vmatpush1.msra.mxu0 0.0
      %479 = vmatprep.subr.mxu0 0.0
      %480 = vmatpush1.msra.mxu0 0.0
      %481 = vmatprep.subr.mxu0 0.0
      %482 = vmatpush1.msra.mxu0 0.0
      %483 = vmatprep.mubr.f32.mxu0 0.0
      %484 = vmatmul.mubr.f32.gmra.mrb[0].mxu0 %v417
      %v485 = vpop.f32.mrb[0].mxu0
      %v486 = vadd.f32 %v413, %v485
      %v487 = vpop.f32.mrb[0].mxu0
      %488 = vdwg.mxu0
      %489 = vst [vmem:[#allocation9] sm:$0x3] %v486
    $region45: #{tpu_custom_call.1} parent=1 // pred_fallthru
      _
    // Predicated region
    $region46: #{tpu_custom_call.1} parent=1 // pred_check
      _
    $region47: #{tpu_custom_call.1} parent=1 // pred_check_branch
      %491 = sbr.rel (0) target = $region49
    $region48: #{tpu_custom_call.1} parent=1 // pred_region
      %s493 = ssub.s32 32, 32
      %494 = vsyncadd [#allocation5], %s493
      %s496 = sshll.u32 [#allocation9], 4
      %s497 = int_to_ptr.vmem [resolvable:$true] %s496
      %499 = dma.vmem_to_hbm [thread:$0]  %s497, 32, %s6, [#allocation5]
    $region49: #{tpu_custom_call.1} parent=1 // pred_fallthru
      _
    // Predicated region
    $region50: #{tpu_custom_call.1} parent=1 // pred_check
      _
    $region51: #{tpu_custom_call.1} parent=1 // pred_check_branch
      %501 = sbr.rel (0) target = $region53
    $region52: #{tpu_custom_call.1} parent=1 // pred_region
      %502 = dma.done [#allocation5], 32
    $region53: #{tpu_custom_call.1} parent=1 // pred_fallthru
      _
    %503 = vsyncpa [#allocation4], 1
    %504 = vsyncpa [#allocation7], 1
    %505 = vsyncpa [#allocation5], 1

</llo_original>
